<compile_context>
chip_gen: v5e
topology: v5e:2x2
jax: 0.10.0
libtpu: 0.0.40
codegen_flags: <defaults>
</compile_context>

<pallas_src>
import jax
import jax.numpy as jnp
from jax.experimental import pallas as pl
from jax.experimental.pallas import tpu as pltpu

LANES = 128
SUBLANES = 8


def _round_up(x, m):
    return ((x + m - 1) // m) * m


# ---------------------------------------------------------------------------
# Fused Pallas kernel (all LSTM layers + linear head), gridless.
# ---------------------------------------------------------------------------

def make_fused_lstm_kernel(num_layers, T, Bp, H, D_in, W, offsets):
    """Kernel args:
         x_ref   : (T*Bp, D_in)  time-major, batch padded to Bp sublanes
         w_ref   : (R, W)        packed weight slab (see pack_weights)
         out_ref : (num_layers*Bp, W) lane-padded head output
    """
    off_wih0, off_whh0, off_wcat, off_wlin, off_bias = offsets
    n_bias_rows = _round_up(num_layers + 1, SUBLANES)

    def kernel(x_ref, w_ref, out_ref):
        # ---- Load every weight block once; they stay in vregs for the whole kernel.
        wih0 = w_ref[off_wih0:off_wih0 + D_in, 0:4 * H]            # (D_in, 4H)
        whh0 = w_ref[off_whh0:off_whh0 + H, 0:4 * H]               # (H, 4H)
        wcat = [None] * num_layers
        for l in range(1, num_layers):
            o = off_wcat[l - 1]
            wcat[l] = w_ref[o:o + 2 * H, 0:4 * H]                  # (2H, 4H) = [Wih;Whh]
        wlin = w_ref[off_wlin:off_wlin + H, :]                     # (H, W), zeros >= O
        bias_blk = w_ref[off_bias:off_bias + n_bias_rows, :]       # aligned (8k, W)
        biases = [bias_blk[l:l + 1, 0:4 * H] for l in range(num_layers)]
        b_lin = bias_blk[num_layers:num_layers + 1, :]             # (1, W)

        # ---- Layer-0 input projection (+bias) for ALL steps: one MXU matmul.
        xp0 = jnp.dot(x_ref[...], wih0,
                      preferred_element_type=jnp.float32) + biases[0]   # (T*Bp, 4H)

        # ---- Wavefront-scheduled recurrence: layer l runs step t at wave w = t + l,
        #      so adjacent layers' serial chains overlap instead of running back to back.
        h = [jnp.zeros((Bp, H), jnp.float32) for _ in range(num_layers)]
        c = [jnp.zeros((Bp, H), jnp.float32) for _ in range(num_layers)]
        y = [[None] * T for _ in range(num_layers)]                # lower-layer outputs

        for wave in range(T + num_layers - 1):
            for l in range(num_layers):
                t = wave - l
                if not (0 <= t < T):
                    continue
                if l == 0:
                    gates = xp0[t * Bp:(t + 1) * Bp, :] + jnp.dot(
                        h[0], whh0, preferred_element_type=jnp.float32)
                else:
                    # Fused input+recurrent projection: one (Bp,2H)x(2H,4H) matmul.
                    xin = jnp.concatenate([y[l - 1][t], h[l]], axis=-1)
                    gates = jnp.dot(xin, wcat[l],
                                    preferred_element_type=jnp.float32) + biases[l]
                # Two wide EUP pushes over the full (Bp, 4H) slab, then 32-lane slices.
                sig = jax.nn.sigmoid(gates)
                tnh = jnp.tanh(gates)
                i_g = sig[:, 0:H]
                f_g = sig[:, H:2 * H]
                g_g = tnh[:, 2 * H:3 * H]
                o_g = sig[:, 3 * H:4 * H]
                c[l] = f_g * c[l] + i_g * g_g
                h[l] = o_g * jnp.tanh(c[l])
                if l < num_layers - 1:
                    y[l][t] = h[l]

        # ---- Linear head: per-layer aligned (Bp, W) block store (unmasked vst).
        for l in range(num_layers):
            out_ref[l * Bp:(l + 1) * Bp, :] = (
                jnp.dot(h[l], wlin, preferred_element_type=jnp.float32) + b_lin)

    return kernel


# ---------------------------------------------------------------------------
# Weight packing: one lane-padded (R, 128) slab, 8-row-aligned sections.
# ---------------------------------------------------------------------------

def pack_weights(params, D_in, H, O, num_layers):
    W = _round_up(max(4 * H, O, LANES), LANES)
    r = 0

    def add_block(rows_needed):
        nonlocal r
        start = r
        r += _round_up(rows_needed, SUBLANES)
        return start

    lstm_p = params["lstm"]
    off_wih0 = add_block(D_in)
    off_wcat = []
    off_whh0 = add_block(H)
    for _ in range(1, num_layers):
        off_wcat.append(add_block(2 * H))
    off_wlin = add_block(H)
    off_bias = add_block(num_layers + 1)

    slab = jnp.zeros((r, W), jnp.float32)
    slab = slab.at[off_wih0:off_wih0 + D_in, 0:4 * H].set(lstm_p[0]["w_ih_t"])
    slab = slab.at[off_whh0:off_whh0 + H, 0:4 * H].set(lstm_p[0]["w_hh_t"])
    for l in range(1, num_layers):
        o = off_wcat[l - 1]
        slab = slab.at[o:o + H, 0:4 * H].set(lstm_p[l]["w_ih_t"])
        slab = slab.at[o + H:o + 2 * H, 0:4 * H].set(lstm_p[l]["w_hh_t"])
    slab = slab.at[off_wlin:off_wlin + H, 0:O].set(params["w_lin_t"])
    for l in range(num_layers):
        slab = slab.at[off_bias + l, 0:4 * H].set(lstm_p[l]["bias"].reshape(4 * H))
    slab = slab.at[off_bias + num_layers, 0:O].set(params["b_lin"].reshape(O))

    offsets = (off_wih0, off_whh0, tuple(off_wcat), off_wlin, off_bias)
    return slab, offsets, W


# ---------------------------------------------------------------------------
# Wrappers
# ---------------------------------------------------------------------------

def lstm_model_forward(x, params):
    """x: (B, T, input_size) batch-first, like the PyTorch module.
    Returns (num_layers * B, output_size) == linear(final_h.view(-1, H))."""
    B, T, D_in = x.shape
    lstm_p = params["lstm"]
    num_layers = len(lstm_p)
    H = lstm_p[0]["w_hh_t"].shape[0]
    O = params["w_lin_t"].shape[1]
    Bp = _round_up(max(B, SUBLANES), SUBLANES)

    slab, offsets, W = pack_weights(params, D_in, H, O, num_layers)

    # Time-major, batch zero-padded to Bp sublanes, flattened to (T*Bp, D_in).
    x_t = jnp.transpose(x, (1, 0, 2)).astype(jnp.float32)          # (T, B, D)
    x_t = jnp.pad(x_t, ((0, 0), (0, Bp - B), (0, 0)))              # (T, Bp, D)
    x2d = x_t.reshape(T * Bp, D_in)

    vmem = pltpu.MemorySpace.VMEM
    out = pl.pallas_call(
        make_fused_lstm_kernel(num_layers, T, Bp, H, D_in, W, offsets),
        out_shape=jax.ShapeDtypeStruct((num_layers * Bp, W), jnp.float32),
        in_specs=[pl.BlockSpec(memory_space=vmem)] * 2,
        out_specs=pl.BlockSpec(memory_space=vmem),
    )(x2d, slab)

    # Strip batch padding / lane padding; layer-major row order matches
    # final_h.view(-1, H) in the PyTorch module.
    return out.reshape(num_layers, Bp, W)[:, :B, :O].reshape(num_layers * B, O)


def lstm_reference(x, params):
    """Pure-JAX (XLA) reference of the same forward, for correctness checking."""
    B, T, _ = x.shape
    layer_in = x.astype(jnp.float32)
    final_hs = []
    for p in params["lstm"]:
        wih, whh, b = p["w_ih_t"], p["w_hh_t"], p["bias"]
        H = whh.shape[0]
        h = jnp.zeros((B, H), jnp.float32)
        c = jnp.zeros((B, H), jnp.float32)
        outs = []
        for t in range(T):
            g = layer_in[:, t, :] @ wih + h @ whh + b
            i = jax.nn.sigmoid(g[:, 0:H])
            f = jax.nn.sigmoid(g[:, H:2 * H])
            gg = jnp.tanh(g[:, 2 * H:3 * H])
            o = jax.nn.sigmoid(g[:, 3 * H:4 * H])
            c = f * c + i * gg
            h = o * jnp.tanh(c)
            outs.append(h)
        layer_in = jnp.stack(outs, axis=1)
        final_hs.append(h)
    lin_in = jnp.concatenate(final_hs, axis=0)
    return lin_in @ params["w_lin_t"] + params["b_lin"]


def init_params(key, input_size, hidden_size, num_layers, output_size):
    """Deterministic init mirroring nn.LSTM / nn.Linear (uniform(-1/sqrt(H), 1/sqrt(H)))."""
    k = 1.0 / jnp.sqrt(jnp.float32(hidden_size))
    params = {"lstm": []}
    for layer in range(num_layers):
        d_in = input_size if layer == 0 else hidden_size
        key, k1, k2, k3, k4 = jax.random.split(key, 5)
        w_ih = jax.random.uniform(k1, (4 * hidden_size, d_in), jnp.float32, -k, k)
        w_hh = jax.random.uniform(k2, (4 * hidden_size, hidden_size), jnp.float32, -k, k)
        b_ih = jax.random.uniform(k3, (4 * hidden_size,), jnp.float32, -k, k)
        b_hh = jax.random.uniform(k4, (4 * hidden_size,), jnp.float32, -k, k)
        params["lstm"].append({
            "w_ih_t": w_ih.T,                               # (d_in, 4H)
            "w_hh_t": w_hh.T,                               # (H, 4H)
            "bias": (b_ih + b_hh).reshape(1, 4 * hidden_size),
        })
    key, k5, k6 = jax.random.split(key, 3)
    w_lin = jax.random.uniform(k5, (output_size, hidden_size), jnp.float32, -k, k)
    b_lin = jax.random.uniform(k6, (output_size,), jnp.float32, -k, k)
    params["w_lin_t"] = w_lin.T                             # (H, O)
    params["b_lin"] = b_lin.reshape(1, output_size)
    return params


if __name__ == "__main__":
    # Small shapes consistent with the module's forward.
    batch, seq = 2, 8
    input_size, hidden_size, num_layers, output_size = 16, 32, 2, 8

    key = jax.random.PRNGKey(0)
    key, kx = jax.random.split(key)
    x = jax.random.normal(kx, (batch, seq, input_size), jnp.float32)

    params = init_params(key, input_size, hidden_size, num_layers, output_size)

    out = lstm_model_forward(x, params)
    out = jax.block_until_ready(out)
    assert out.shape == (num_layers * batch, output_size), out.shape

    ref = jax.block_until_ready(lstm_reference(x, params))
    max_err = float(jnp.max(jnp.abs(out - ref)))
    assert max_err < 1e-3, f"mismatch vs reference: {max_err}"

    print("KERNEL_OK")
</pallas_src>

<mosaic_0001>
module attributes {stable_mosaic.version = 11 : i64} {
  func.func @kernel(%arg0: memref<64x16xf32, #tpu.memory_space<vmem>>, %arg1: memref<152x128xf32, #tpu.memory_space<vmem>>, %arg2: memref<16x128xf32, #tpu.memory_space<vmem>>) attributes {dimension_semantics = [], scalar_prefetch = 0 : i64, scratch_operands = 0 : i64, tpu.core_type = #tpu.core_type<tc>} {
    %c0 = arith.constant 0 : index
    %c0_0 = arith.constant 0 : index
    %0 = vector.load %arg1[%c0, %c0_0] : memref<152x128xf32, #tpu.memory_space<vmem>>, vector<16x128xf32>
    %c16 = arith.constant 16 : index
    %c0_1 = arith.constant 0 : index
    %1 = vector.load %arg1[%c16, %c0_1] : memref<152x128xf32, #tpu.memory_space<vmem>>, vector<32x128xf32>
    %c48 = arith.constant 48 : index
    %c0_2 = arith.constant 0 : index
    %2 = vector.load %arg1[%c48, %c0_2] : memref<152x128xf32, #tpu.memory_space<vmem>>, vector<64x128xf32>
    %c112 = arith.constant 112 : index
    %c0_3 = arith.constant 0 : index
    %3 = vector.load %arg1[%c112, %c0_3] : memref<152x128xf32, #tpu.memory_space<vmem>>, vector<32x128xf32>
    %c144 = arith.constant 144 : index
    %c0_4 = arith.constant 0 : index
    %4 = vector.load %arg1[%c144, %c0_4] : memref<152x128xf32, #tpu.memory_space<vmem>>, vector<8x128xf32>
    %5 = vector.extract_strided_slice %4 {offsets = [0, 0], sizes = [1, 128], strides = [1, 1]} : vector<8x128xf32> to vector<1x128xf32>
    %6 = vector.extract_strided_slice %4 {offsets = [1, 0], sizes = [1, 128], strides = [1, 1]} : vector<8x128xf32> to vector<1x128xf32>
    %7 = vector.extract_strided_slice %4 {offsets = [2, 0], sizes = [1, 128], strides = [1, 1]} : vector<8x128xf32> to vector<1x128xf32>
    %c0_5 = arith.constant 0 : index
    %c0_6 = arith.constant 0 : index
    %8 = vector.load %arg0[%c0_5, %c0_6] : memref<64x16xf32, #tpu.memory_space<vmem>>, vector<64x16xf32>
    %cst = arith.constant dense<0.000000e+00> : vector<64x128xf32>
    %9 = tpu.matmul %8, %0, %cst {dimension_numbers = #tpu.dot_dimension_numbers<[1], [0], [0], [1], [0, 0, 1, 1], [], []>} : vector<64x16xf32>, vector<16x128xf32>, vector<64x128xf32> -> vector<64x128xf32>
    %10 = vector.broadcast %5 : vector<1x128xf32> to vector<64x128xf32>
    %11 = arith.addf %9, %10 : vector<64x128xf32>
    %cst_7 = arith.constant 0.000000e+00 : f32
    %12 = vector.broadcast %cst_7 : f32 to vector<8x32xf32>
    %cst_8 = arith.constant 0.000000e+00 : f32
    %13 = vector.broadcast %cst_8 : f32 to vector<8x32xf32>
    %cst_9 = arith.constant 0.000000e+00 : f32
    %14 = vector.broadcast %cst_9 : f32 to vector<8x32xf32>
    %cst_10 = arith.constant 0.000000e+00 : f32
    %15 = vector.broadcast %cst_10 : f32 to vector<8x32xf32>
    %16 = vector.extract_strided_slice %11 {offsets = [0, 0], sizes = [8, 128], strides = [1, 1]} : vector<64x128xf32> to vector<8x128xf32>
    %cst_11 = arith.constant dense<0.000000e+00> : vector<8x128xf32>
    %17 = tpu.matmul %12, %1, %cst_11 {dimension_numbers = #tpu.dot_dimension_numbers<[1], [0], [0], [1], [0, 0, 1, 1], [], []>} : vector<8x32xf32>, vector<32x128xf32>, vector<8x128xf32> -> vector<8x128xf32>
    %18 = arith.addf %16, %17 : vector<8x128xf32>
    %19 = arith.negf %18 : vector<8x128xf32>
    %20 = math.exp %19 : vector<8x128xf32>
    %cst_12 = arith.constant 1.000000e+00 : f32
    %21 = vector.broadcast %cst_12 : f32 to vector<8x128xf32>
    %22 = arith.addf %21, %20 : vector<8x128xf32>
    %23 = arith.divf %21, %22 : vector<8x128xf32>
    %24 = math.tanh %18 : vector<8x128xf32>
    %25 = vector.extract_strided_slice %23 {offsets = [0, 0], sizes = [8, 32], strides = [1, 1]} : vector<8x128xf32> to vector<8x32xf32>
    %26 = vector.extract_strided_slice %23 {offsets = [0, 32], sizes = [8, 32], strides = [1, 1]} : vector<8x128xf32> to vector<8x32xf32>
    %27 = vector.extract_strided_slice %24 {offsets = [0, 64], sizes = [8, 32], strides = [1, 1]} : vector<8x128xf32> to vector<8x32xf32>
    %28 = vector.extract_strided_slice %23 {offsets = [0, 96], sizes = [8, 32], strides = [1, 1]} : vector<8x128xf32> to vector<8x32xf32>
    %29 = arith.mulf %26, %14 : vector<8x32xf32>
    %30 = arith.mulf %25, %27 : vector<8x32xf32>
    %31 = arith.addf %29, %30 : vector<8x32xf32>
    %32 = math.tanh %31 : vector<8x32xf32>
    %33 = arith.mulf %28, %32 : vector<8x32xf32>
    %34 = vector.extract_strided_slice %11 {offsets = [8, 0], sizes = [8, 128], strides = [1, 1]} : vector<64x128xf32> to vector<8x128xf32>
    %cst_13 = arith.constant dense<0.000000e+00> : vector<8x128xf32>
    %35 = tpu.matmul %33, %1, %cst_13 {dimension_numbers = #tpu.dot_dimension_numbers<[1], [0], [0], [1], [0, 0, 1, 1], [], []>} : vector<8x32xf32>, vector<32x128xf32>, vector<8x128xf32> -> vector<8x128xf32>
    %36 = arith.addf %34, %35 : vector<8x128xf32>
    %37 = arith.negf %36 : vector<8x128xf32>
    %38 = math.exp %37 : vector<8x128xf32>
    %cst_14 = arith.constant 1.000000e+00 : f32
    %39 = vector.broadcast %cst_14 : f32 to vector<8x128xf32>
    %40 = arith.addf %39, %38 : vector<8x128xf32>
    %41 = arith.divf %39, %40 : vector<8x128xf32>
    %42 = math.tanh %36 : vector<8x128xf32>
    %43 = vector.extract_strided_slice %41 {offsets = [0, 0], sizes = [8, 32], strides = [1, 1]} : vector<8x128xf32> to vector<8x32xf32>
    %44 = vector.extract_strided_slice %41 {offsets = [0, 32], sizes = [8, 32], strides = [1, 1]} : vector<8x128xf32> to vector<8x32xf32>
    %45 = vector.extract_strided_slice %42 {offsets = [0, 64], sizes = [8, 32], strides = [1, 1]} : vector<8x128xf32> to vector<8x32xf32>
    %46 = vector.extract_strided_slice %41 {offsets = [0, 96], sizes = [8, 32], strides = [1, 1]} : vector<8x128xf32> to vector<8x32xf32>
    %47 = arith.mulf %44, %31 : vector<8x32xf32>
    %48 = arith.mulf %43, %45 : vector<8x32xf32>
    %49 = arith.addf %47, %48 : vector<8x32xf32>
    %50 = math.tanh %49 : vector<8x32xf32>
    %51 = arith.mulf %46, %50 : vector<8x32xf32>
    %52 = tpu.concatenate %33, %13 in 1 : vector<8x32xf32>, vector<8x32xf32> -> vector<8x64xf32>
    %cst_15 = arith.constant dense<0.000000e+00> : vector<8x128xf32>
    %53 = tpu.matmul %52, %2, %cst_15 {dimension_numbers = #tpu.dot_dimension_numbers<[1], [0], [0], [1], [0, 0, 1, 1], [], []>} : vector<8x64xf32>, vector<64x128xf32>, vector<8x128xf32> -> vector<8x128xf32>
    %54 = vector.broadcast %6 : vector<1x128xf32> to vector<8x128xf32>
    %55 = arith.addf %53, %54 : vector<8x128xf32>
    %56 = arith.negf %55 : vector<8x128xf32>
    %57 = math.exp %56 : vector<8x128xf32>
    %cst_16 = arith.constant 1.000000e+00 : f32
    %58 = vector.broadcast %cst_16 : f32 to vector<8x128xf32>
    %59 = arith.addf %58, %57 : vector<8x128xf32>
    %60 = arith.divf %58, %59 : vector<8x128xf32>
    %61 = math.tanh %55 : vector<8x128xf32>
    %62 = vector.extract_strided_slice %60 {offsets = [0, 0], sizes = [8, 32], strides = [1, 1]} : vector<8x128xf32> to vector<8x32xf32>
    %63 = vector.extract_strided_slice %60 {offsets = [0, 32], sizes = [8, 32], strides = [1, 1]} : vector<8x128xf32> to vector<8x32xf32>
    %64 = vector.extract_strided_slice %61 {offsets = [0, 64], sizes = [8, 32], strides = [1, 1]} : vector<8x128xf32> to vector<8x32xf32>
    %65 = vector.extract_strided_slice %60 {offsets = [0, 96], sizes = [8, 32], strides = [1, 1]} : vector<8x128xf32> to vector<8x32xf32>
    %66 = arith.mulf %63, %15 : vector<8x32xf32>
    %67 = arith.mulf %62, %64 : vector<8x32xf32>
    %68 = arith.addf %66, %67 : vector<8x32xf32>
    %69 = math.tanh %68 : vector<8x32xf32>
    %70 = arith.mulf %65, %69 : vector<8x32xf32>
    %71 = vector.extract_strided_slice %11 {offsets = [16, 0], sizes = [8, 128], strides = [1, 1]} : vector<64x128xf32> to vector<8x128xf32>
    %cst_17 = arith.constant dense<0.000000e+00> : vector<8x128xf32>
    %72 = tpu.matmul %51, %1, %cst_17 {dimension_numbers = #tpu.dot_dimension_numbers<[1], [0], [0], [1], [0, 0, 1, 1], [], []>} : vector<8x32xf32>, vector<32x128xf32>, vector<8x128xf32> -> vector<8x128xf32>
    %73 = arith.addf %71, %72 : vector<8x128xf32>
    %74 = arith.negf %73 : vector<8x128xf32>
    %75 = math.exp %74 : vector<8x128xf32>
    %cst_18 = arith.constant 1.000000e+00 : f32
    %76 = vector.broadcast %cst_18 : f32 to vector<8x128xf32>
    %77 = arith.addf %76, %75 : vector<8x128xf32>
    %78 = arith.divf %76, %77 : vector<8x128xf32>
    %79 = math.tanh %73 : vector<8x128xf32>
    %80 = vector.extract_strided_slice %78 {offsets = [0, 0], sizes = [8, 32], strides = [1, 1]} : vector<8x128xf32> to vector<8x32xf32>
    %81 = vector.extract_strided_slice %78 {offsets = [0, 32], sizes = [8, 32], strides = [1, 1]} : vector<8x128xf32> to vector<8x32xf32>
    %82 = vector.extract_strided_slice %79 {offsets = [0, 64], sizes = [8, 32], strides = [1, 1]} : vector<8x128xf32> to vector<8x32xf32>
    %83 = vector.extract_strided_slice %78 {offsets = [0, 96], sizes = [8, 32], strides = [1, 1]} : vector<8x128xf32> to vector<8x32xf32>
    %84 = arith.mulf %81, %49 : vector<8x32xf32>
    %85 = arith.mulf %80, %82 : vector<8x32xf32>
    %86 = arith.addf %84, %85 : vector<8x32xf32>
    %87 = math.tanh %86 : vector<8x32xf32>
    %88 = arith.mulf %83, %87 : vector<8x32xf32>
    %89 = tpu.concatenate %51, %70 in 1 : vector<8x32xf32>, vector<8x32xf32> -> vector<8x64xf32>
    %cst_19 = arith.constant dense<0.000000e+00> : vector<8x128xf32>
    %90 = tpu.matmul %89, %2, %cst_19 {dimension_numbers = #tpu.dot_dimension_numbers<[1], [0], [0], [1], [0, 0, 1, 1], [], []>} : vector<8x64xf32>, vector<64x128xf32>, vector<8x128xf32> -> vector<8x128xf32>
    %91 = vector.broadcast %6 : vector<1x128xf32> to vector<8x128xf32>
    %92 = arith.addf %90, %91 : vector<8x128xf32>
    %93 = arith.negf %92 : vector<8x128xf32>
    %94 = math.exp %93 : vector<8x128xf32>
    %cst_20 = arith.constant 1.000000e+00 : f32
    %95 = vector.broadcast %cst_20 : f32 to vector<8x128xf32>
    %96 = arith.addf %95, %94 : vector<8x128xf32>
    %97 = arith.divf %95, %96 : vector<8x128xf32>
    %98 = math.tanh %92 : vector<8x128xf32>
    %99 = vector.extract_strided_slice %97 {offsets = [0, 0], sizes = [8, 32], strides = [1, 1]} : vector<8x128xf32> to vector<8x32xf32>
    %100 = vector.extract_strided_slice %97 {offsets = [0, 32], sizes = [8, 32], strides = [1, 1]} : vector<8x128xf32> to vector<8x32xf32>
    %101 = vector.extract_strided_slice %98 {offsets = [0, 64], sizes = [8, 32], strides = [1, 1]} : vector<8x128xf32> to vector<8x32xf32>
    %102 = vector.extract_strided_slice %97 {offsets = [0, 96], sizes = [8, 32], strides = [1, 1]} : vector<8x128xf32> to vector<8x32xf32>
    %103 = arith.mulf %100, %68 : vector<8x32xf32>
    %104 = arith.mulf %99, %101 : vector<8x32xf32>
    %105 = arith.addf %103, %104 : vector<8x32xf32>
    %106 = math.tanh %105 : vector<8x32xf32>
    %107 = arith.mulf %102, %106 : vector<8x32xf32>
    %108 = vector.extract_strided_slice %11 {offsets = [24, 0], sizes = [8, 128], strides = [1, 1]} : vector<64x128xf32> to vector<8x128xf32>
    %cst_21 = arith.constant dense<0.000000e+00> : vector<8x128xf32>
    %109 = tpu.matmul %88, %1, %cst_21 {dimension_numbers = #tpu.dot_dimension_numbers<[1], [0], [0], [1], [0, 0, 1, 1], [], []>} : vector<8x32xf32>, vector<32x128xf32>, vector<8x128xf32> -> vector<8x128xf32>
    %110 = arith.addf %108, %109 : vector<8x128xf32>
    %111 = arith.negf %110 : vector<8x128xf32>
    %112 = math.exp %111 : vector<8x128xf32>
    %cst_22 = arith.constant 1.000000e+00 : f32
    %113 = vector.broadcast %cst_22 : f32 to vector<8x128xf32>
    %114 = arith.addf %113, %112 : vector<8x128xf32>
    %115 = arith.divf %113, %114 : vector<8x128xf32>
    %116 = math.tanh %110 : vector<8x128xf32>
    %117 = vector.extract_strided_slice %115 {offsets = [0, 0], sizes = [8, 32], strides = [1, 1]} : vector<8x128xf32> to vector<8x32xf32>
    %118 = vector.extract_strided_slice %115 {offsets = [0, 32], sizes = [8, 32], strides = [1, 1]} : vector<8x128xf32> to vector<8x32xf32>
    %119 = vector.extract_strided_slice %116 {offsets = [0, 64], sizes = [8, 32], strides = [1, 1]} : vector<8x128xf32> to vector<8x32xf32>
    %120 = vector.extract_strided_slice %115 {offsets = [0, 96], sizes = [8, 32], strides = [1, 1]} : vector<8x128xf32> to vector<8x32xf32>
    %121 = arith.mulf %118, %86 : vector<8x32xf32>
    %122 = arith.mulf %117, %119 : vector<8x32xf32>
    %123 = arith.addf %121, %122 : vector<8x32xf32>
    %124 = math.tanh %123 : vector<8x32xf32>
    %125 = arith.mulf %120, %124 : vector<8x32xf32>
    %126 = tpu.concatenate %88, %107 in 1 : vector<8x32xf32>, vector<8x32xf32> -> vector<8x64xf32>
    %cst_23 = arith.constant dense<0.000000e+00> : vector<8x128xf32>
    %127 = tpu.matmul %126, %2, %cst_23 {dimension_numbers = #tpu.dot_dimension_numbers<[1], [0], [0], [1], [0, 0, 1, 1], [], []>} : vector<8x64xf32>, vector<64x128xf32>, vector<8x128xf32> -> vector<8x128xf32>
    %128 = vector.broadcast %6 : vector<1x128xf32> to vector<8x128xf32>
    %129 = arith.addf %127, %128 : vector<8x128xf32>
    %130 = arith.negf %129 : vector<8x128xf32>
    %131 = math.exp %130 : vector<8x128xf32>
    %cst_24 = arith.constant 1.000000e+00 : f32
    %132 = vector.broadcast %cst_24 : f32 to vector<8x128xf32>
    %133 = arith.addf %132, %131 : vector<8x128xf32>
    %134 = arith.divf %132, %133 : vector<8x128xf32>
    %135 = math.tanh %129 : vector<8x128xf32>
    %136 = vector.extract_strided_slice %134 {offsets = [0, 0], sizes = [8, 32], strides = [1, 1]} : vector<8x128xf32> to vector<8x32xf32>
    %137 = vector.extract_strided_slice %134 {offsets = [0, 32], sizes = [8, 32], strides = [1, 1]} : vector<8x128xf32> to vector<8x32xf32>
    %138 = vector.extract_strided_slice %135 {offsets = [0, 64], sizes = [8, 32], strides = [1, 1]} : vector<8x128xf32> to vector<8x32xf32>
    %139 = vector.extract_strided_slice %134 {offsets = [0, 96], sizes = [8, 32], strides = [1, 1]} : vector<8x128xf32> to vector<8x32xf32>
    %140 = arith.mulf %137, %105 : vector<8x32xf32>
    %141 = arith.mulf %136, %138 : vector<8x32xf32>
    %142 = arith.addf %140, %141 : vector<8x32xf32>
    %143 = math.tanh %142 : vector<8x32xf32>
    %144 = arith.mulf %139, %143 : vector<8x32xf32>
    %145 = vector.extract_strided_slice %11 {offsets = [32, 0], sizes = [8, 128], strides = [1, 1]} : vector<64x128xf32> to vector<8x128xf32>
    %cst_25 = arith.constant dense<0.000000e+00> : vector<8x128xf32>
    %146 = tpu.matmul %125, %1, %cst_25 {dimension_numbers = #tpu.dot_dimension_numbers<[1], [0], [0], [1], [0, 0, 1, 1], [], []>} : vector<8x32xf32>, vector<32x128xf32>, vector<8x128xf32> -> vector<8x128xf32>
    %147 = arith.addf %145, %146 : vector<8x128xf32>
    %148 = arith.negf %147 : vector<8x128xf32>
    %149 = math.exp %148 : vector<8x128xf32>
    %cst_26 = arith.constant 1.000000e+00 : f32
    %150 = vector.broadcast %cst_26 : f32 to vector<8x128xf32>
    %151 = arith.addf %150, %149 : vector<8x128xf32>
    %152 = arith.divf %150, %151 : vector<8x128xf32>
    %153 = math.tanh %147 : vector<8x128xf32>
    %154 = vector.extract_strided_slice %152 {offsets = [0, 0], sizes = [8, 32], strides = [1, 1]} : vector<8x128xf32> to vector<8x32xf32>
    %155 = vector.extract_strided_slice %152 {offsets = [0, 32], sizes = [8, 32], strides = [1, 1]} : vector<8x128xf32> to vector<8x32xf32>
    %156 = vector.extract_strided_slice %153 {offsets = [0, 64], sizes = [8, 32], strides = [1, 1]} : vector<8x128xf32> to vector<8x32xf32>
    %157 = vector.extract_strided_slice %152 {offsets = [0, 96], sizes = [8, 32], strides = [1, 1]} : vector<8x128xf32> to vector<8x32xf32>
    %158 = arith.mulf %155, %123 : vector<8x32xf32>
    %159 = arith.mulf %154, %156 : vector<8x32xf32>
    %160 = arith.addf %158, %159 : vector<8x32xf32>
    %161 = math.tanh %160 : vector<8x32xf32>
    %162 = arith.mulf %157, %161 : vector<8x32xf32>
    %163 = tpu.concatenate %125, %144 in 1 : vector<8x32xf32>, vector<8x32xf32> -> vector<8x64xf32>
    %cst_27 = arith.constant dense<0.000000e+00> : vector<8x128xf32>
    %164 = tpu.matmul %163, %2, %cst_27 {dimension_numbers = #tpu.dot_dimension_numbers<[1], [0], [0], [1], [0, 0, 1, 1], [], []>} : vector<8x64xf32>, vector<64x128xf32>, vector<8x128xf32> -> vector<8x128xf32>
    %165 = vector.broadcast %6 : vector<1x128xf32> to vector<8x128xf32>
    %166 = arith.addf %164, %165 : vector<8x128xf32>
    %167 = arith.negf %166 : vector<8x128xf32>
    %168 = math.exp %167 : vector<8x128xf32>
    %cst_28 = arith.constant 1.000000e+00 : f32
    %169 = vector.broadcast %cst_28 : f32 to vector<8x128xf32>
    %170 = arith.addf %169, %168 : vector<8x128xf32>
    %171 = arith.divf %169, %170 : vector<8x128xf32>
    %172 = math.tanh %166 : vector<8x128xf32>
    %173 = vector.extract_strided_slice %171 {offsets = [0, 0], sizes = [8, 32], strides = [1, 1]} : vector<8x128xf32> to vector<8x32xf32>
    %174 = vector.extract_strided_slice %171 {offsets = [0, 32], sizes = [8, 32], strides = [1, 1]} : vector<8x128xf32> to vector<8x32xf32>
    %175 = vector.extract_strided_slice %172 {offsets = [0, 64], sizes = [8, 32], strides = [1, 1]} : vector<8x128xf32> to vector<8x32xf32>
    %176 = vector.extract_strided_slice %171 {offsets = [0, 96], sizes = [8, 32], strides = [1, 1]} : vector<8x128xf32> to vector<8x32xf32>
    %177 = arith.mulf %174, %142 : vector<8x32xf32>
    %178 = arith.mulf %173, %175 : vector<8x32xf32>
    %179 = arith.addf %177, %178 : vector<8x32xf32>
    %180 = math.tanh %179 : vector<8x32xf32>
    %181 = arith.mulf %176, %180 : vector<8x32xf32>
    %182 = vector.extract_strided_slice %11 {offsets = [40, 0], sizes = [8, 128], strides = [1, 1]} : vector<64x128xf32> to vector<8x128xf32>
    %cst_29 = arith.constant dense<0.000000e+00> : vector<8x128xf32>
    %183 = tpu.matmul %162, %1, %cst_29 {dimension_numbers = #tpu.dot_dimension_numbers<[1], [0], [0], [1], [0, 0, 1, 1], [], []>} : vector<8x32xf32>, vector<32x128xf32>, vector<8x128xf32> -> vector<8x128xf32>
    %184 = arith.addf %182, %183 : vector<8x128xf32>
    %185 = arith.negf %184 : vector<8x128xf32>
    %186 = math.exp %185 : vector<8x128xf32>
    %cst_30 = arith.constant 1.000000e+00 : f32
    %187 = vector.broadcast %cst_30 : f32 to vector<8x128xf32>
    %188 = arith.addf %187, %186 : vector<8x128xf32>
    %189 = arith.divf %187, %188 : vector<8x128xf32>
    %190 = math.tanh %184 : vector<8x128xf32>
    %191 = vector.extract_strided_slice %189 {offsets = [0, 0], sizes = [8, 32], strides = [1, 1]} : vector<8x128xf32> to vector<8x32xf32>
    %192 = vector.extract_strided_slice %189 {offsets = [0, 32], sizes = [8, 32], strides = [1, 1]} : vector<8x128xf32> to vector<8x32xf32>
    %193 = vector.extract_strided_slice %190 {offsets = [0, 64], sizes = [8, 32], strides = [1, 1]} : vector<8x128xf32> to vector<8x32xf32>
    %194 = vector.extract_strided_slice %189 {offsets = [0, 96], sizes = [8, 32], strides = [1, 1]} : vector<8x128xf32> to vector<8x32xf32>
    %195 = arith.mulf %192, %160 : vector<8x32xf32>
    %196 = arith.mulf %191, %193 : vector<8x32xf32>
    %197 = arith.addf %195, %196 : vector<8x32xf32>
    %198 = math.tanh %197 : vector<8x32xf32>
    %199 = arith.mulf %194, %198 : vector<8x32xf32>
    %200 = tpu.concatenate %162, %181 in 1 : vector<8x32xf32>, vector<8x32xf32> -> vector<8x64xf32>
    %cst_31 = arith.constant dense<0.000000e+00> : vector<8x128xf32>
    %201 = tpu.matmul %200, %2, %cst_31 {dimension_numbers = #tpu.dot_dimension_numbers<[1], [0], [0], [1], [0, 0, 1, 1], [], []>} : vector<8x64xf32>, vector<64x128xf32>, vector<8x128xf32> -> vector<8x128xf32>
    %202 = vector.broadcast %6 : vector<1x128xf32> to vector<8x128xf32>
    %203 = arith.addf %201, %202 : vector<8x128xf32>
    %204 = arith.negf %203 : vector<8x128xf32>
    %205 = math.exp %204 : vector<8x128xf32>
    %cst_32 = arith.constant 1.000000e+00 : f32
    %206 = vector.broadcast %cst_32 : f32 to vector<8x128xf32>
    %207 = arith.addf %206, %205 : vector<8x128xf32>
    %208 = arith.divf %206, %207 : vector<8x128xf32>
    %209 = math.tanh %203 : vector<8x128xf32>
    %210 = vector.extract_strided_slice %208 {offsets = [0, 0], sizes = [8, 32], strides = [1, 1]} : vector<8x128xf32> to vector<8x32xf32>
    %211 = vector.extract_strided_slice %208 {offsets = [0, 32], sizes = [8, 32], strides = [1, 1]} : vector<8x128xf32> to vector<8x32xf32>
    %212 = vector.extract_strided_slice %209 {offsets = [0, 64], sizes = [8, 32], strides = [1, 1]} : vector<8x128xf32> to vector<8x32xf32>
    %213 = vector.extract_strided_slice %208 {offsets = [0, 96], sizes = [8, 32], strides = [1, 1]} : vector<8x128xf32> to vector<8x32xf32>
    %214 = arith.mulf %211, %179 : vector<8x32xf32>
    %215 = arith.mulf %210, %212 : vector<8x32xf32>
    %216 = arith.addf %214, %215 : vector<8x32xf32>
    %217 = math.tanh %216 : vector<8x32xf32>
    %218 = arith.mulf %213, %217 : vector<8x32xf32>
    %219 = vector.extract_strided_slice %11 {offsets = [48, 0], sizes = [8, 128], strides = [1, 1]} : vector<64x128xf32> to vector<8x128xf32>
    %cst_33 = arith.constant dense<0.000000e+00> : vector<8x128xf32>
    %220 = tpu.matmul %199, %1, %cst_33 {dimension_numbers = #tpu.dot_dimension_numbers<[1], [0], [0], [1], [0, 0, 1, 1], [], []>} : vector<8x32xf32>, vector<32x128xf32>, vector<8x128xf32> -> vector<8x128xf32>
    %221 = arith.addf %219, %220 : vector<8x128xf32>
    %222 = arith.negf %221 : vector<8x128xf32>
    %223 = math.exp %222 : vector<8x128xf32>
    %cst_34 = arith.constant 1.000000e+00 : f32
    %224 = vector.broadcast %cst_34 : f32 to vector<8x128xf32>
    %225 = arith.addf %224, %223 : vector<8x128xf32>
    %226 = arith.divf %224, %225 : vector<8x128xf32>
    %227 = math.tanh %221 : vector<8x128xf32>
    %228 = vector.extract_strided_slice %226 {offsets = [0, 0], sizes = [8, 32], strides = [1, 1]} : vector<8x128xf32> to vector<8x32xf32>
    %229 = vector.extract_strided_slice %226 {offsets = [0, 32], sizes = [8, 32], strides = [1, 1]} : vector<8x128xf32> to vector<8x32xf32>
    %230 = vector.extract_strided_slice %227 {offsets = [0, 64], sizes = [8, 32], strides = [1, 1]} : vector<8x128xf32> to vector<8x32xf32>
    %231 = vector.extract_strided_slice %226 {offsets = [0, 96], sizes = [8, 32], strides = [1, 1]} : vector<8x128xf32> to vector<8x32xf32>
    %232 = arith.mulf %229, %197 : vector<8x32xf32>
    %233 = arith.mulf %228, %230 : vector<8x32xf32>
    %234 = arith.addf %232, %233 : vector<8x32xf32>
    %235 = math.tanh %234 : vector<8x32xf32>
    %236 = arith.mulf %231, %235 : vector<8x32xf32>
    %237 = tpu.concatenate %199, %218 in 1 : vector<8x32xf32>, vector<8x32xf32> -> vector<8x64xf32>
    %cst_35 = arith.constant dense<0.000000e+00> : vector<8x128xf32>
    %238 = tpu.matmul %237, %2, %cst_35 {dimension_numbers = #tpu.dot_dimension_numbers<[1], [0], [0], [1], [0, 0, 1, 1], [], []>} : vector<8x64xf32>, vector<64x128xf32>, vector<8x128xf32> -> vector<8x128xf32>
    %239 = vector.broadcast %6 : vector<1x128xf32> to vector<8x128xf32>
    %240 = arith.addf %238, %239 : vector<8x128xf32>
    %241 = arith.negf %240 : vector<8x128xf32>
    %242 = math.exp %241 : vector<8x128xf32>
    %cst_36 = arith.constant 1.000000e+00 : f32
    %243 = vector.broadcast %cst_36 : f32 to vector<8x128xf32>
    %244 = arith.addf %243, %242 : vector<8x128xf32>
    %245 = arith.divf %243, %244 : vector<8x128xf32>
    %246 = math.tanh %240 : vector<8x128xf32>
    %247 = vector.extract_strided_slice %245 {offsets = [0, 0], sizes = [8, 32], strides = [1, 1]} : vector<8x128xf32> to vector<8x32xf32>
    %248 = vector.extract_strided_slice %245 {offsets = [0, 32], sizes = [8, 32], strides = [1, 1]} : vector<8x128xf32> to vector<8x32xf32>
    %249 = vector.extract_strided_slice %246 {offsets = [0, 64], sizes = [8, 32], strides = [1, 1]} : vector<8x128xf32> to vector<8x32xf32>
    %250 = vector.extract_strided_slice %245 {offsets = [0, 96], sizes = [8, 32], strides = [1, 1]} : vector<8x128xf32> to vector<8x32xf32>
    %251 = arith.mulf %248, %216 : vector<8x32xf32>
    %252 = arith.mulf %247, %249 : vector<8x32xf32>
    %253 = arith.addf %251, %252 : vector<8x32xf32>
    %254 = math.tanh %253 : vector<8x32xf32>
    %255 = arith.mulf %250, %254 : vector<8x32xf32>
    %256 = vector.extract_strided_slice %11 {offsets = [56, 0], sizes = [8, 128], strides = [1, 1]} : vector<64x128xf32> to vector<8x128xf32>
    %cst_37 = arith.constant dense<0.000000e+00> : vector<8x128xf32>
    %257 = tpu.matmul %236, %1, %cst_37 {dimension_numbers = #tpu.dot_dimension_numbers<[1], [0], [0], [1], [0, 0, 1, 1], [], []>} : vector<8x32xf32>, vector<32x128xf32>, vector<8x128xf32> -> vector<8x128xf32>
    %258 = arith.addf %256, %257 : vector<8x128xf32>
    %259 = arith.negf %258 : vector<8x128xf32>
    %260 = math.exp %259 : vector<8x128xf32>
    %cst_38 = arith.constant 1.000000e+00 : f32
    %261 = vector.broadcast %cst_38 : f32 to vector<8x128xf32>
    %262 = arith.addf %261, %260 : vector<8x128xf32>
    %263 = arith.divf %261, %262 : vector<8x128xf32>
    %264 = math.tanh %258 : vector<8x128xf32>
    %265 = vector.extract_strided_slice %263 {offsets = [0, 0], sizes = [8, 32], strides = [1, 1]} : vector<8x128xf32> to vector<8x32xf32>
    %266 = vector.extract_strided_slice %263 {offsets = [0, 32], sizes = [8, 32], strides = [1, 1]} : vector<8x128xf32> to vector<8x32xf32>
    %267 = vector.extract_strided_slice %264 {offsets = [0, 64], sizes = [8, 32], strides = [1, 1]} : vector<8x128xf32> to vector<8x32xf32>
    %268 = vector.extract_strided_slice %263 {offsets = [0, 96], sizes = [8, 32], strides = [1, 1]} : vector<8x128xf32> to vector<8x32xf32>
    %269 = arith.mulf %266, %234 : vector<8x32xf32>
    %270 = arith.mulf %265, %267 : vector<8x32xf32>
    %271 = arith.addf %269, %270 : vector<8x32xf32>
    %272 = math.tanh %271 : vector<8x32xf32>
    %273 = arith.mulf %268, %272 : vector<8x32xf32>
    %274 = tpu.concatenate %236, %255 in 1 : vector<8x32xf32>, vector<8x32xf32> -> vector<8x64xf32>
    %cst_39 = arith.constant dense<0.000000e+00> : vector<8x128xf32>
    %275 = tpu.matmul %274, %2, %cst_39 {dimension_numbers = #tpu.dot_dimension_numbers<[1], [0], [0], [1], [0, 0, 1, 1], [], []>} : vector<8x64xf32>, vector<64x128xf32>, vector<8x128xf32> -> vector<8x128xf32>
    %276 = vector.broadcast %6 : vector<1x128xf32> to vector<8x128xf32>
    %277 = arith.addf %275, %276 : vector<8x128xf32>
    %278 = arith.negf %277 : vector<8x128xf32>
    %279 = math.exp %278 : vector<8x128xf32>
    %cst_40 = arith.constant 1.000000e+00 : f32
    %280 = vector.broadcast %cst_40 : f32 to vector<8x128xf32>
    %281 = arith.addf %280, %279 : vector<8x128xf32>
    %282 = arith.divf %280, %281 : vector<8x128xf32>
    %283 = math.tanh %277 : vector<8x128xf32>
    %284 = vector.extract_strided_slice %282 {offsets = [0, 0], sizes = [8, 32], strides = [1, 1]} : vector<8x128xf32> to vector<8x32xf32>
    %285 = vector.extract_strided_slice %282 {offsets = [0, 32], sizes = [8, 32], strides = [1, 1]} : vector<8x128xf32> to vector<8x32xf32>
    %286 = vector.extract_strided_slice %283 {offsets = [0, 64], sizes = [8, 32], strides = [1, 1]} : vector<8x128xf32> to vector<8x32xf32>
    %287 = vector.extract_strided_slice %282 {offsets = [0, 96], sizes = [8, 32], strides = [1, 1]} : vector<8x128xf32> to vector<8x32xf32>
    %288 = arith.mulf %285, %253 : vector<8x32xf32>
    %289 = arith.mulf %284, %286 : vector<8x32xf32>
    %290 = arith.addf %288, %289 : vector<8x32xf32>
    %291 = math.tanh %290 : vector<8x32xf32>
    %292 = arith.mulf %287, %291 : vector<8x32xf32>
    %293 = tpu.concatenate %273, %292 in 1 : vector<8x32xf32>, vector<8x32xf32> -> vector<8x64xf32>
    %cst_41 = arith.constant dense<0.000000e+00> : vector<8x128xf32>
    %294 = tpu.matmul %293, %2, %cst_41 {dimension_numbers = #tpu.dot_dimension_numbers<[1], [0], [0], [1], [0, 0, 1, 1], [], []>} : vector<8x64xf32>, vector<64x128xf32>, vector<8x128xf32> -> vector<8x128xf32>
    %295 = vector.broadcast %6 : vector<1x128xf32> to vector<8x128xf32>
    %296 = arith.addf %294, %295 : vector<8x128xf32>
    %297 = arith.negf %296 : vector<8x128xf32>
    %298 = math.exp %297 : vector<8x128xf32>
    %cst_42 = arith.constant 1.000000e+00 : f32
    %299 = vector.broadcast %cst_42 : f32 to vector<8x128xf32>
    %300 = arith.addf %299, %298 : vector<8x128xf32>
    %301 = arith.divf %299, %300 : vector<8x128xf32>
    %302 = math.tanh %296 : vector<8x128xf32>
    %303 = vector.extract_strided_slice %301 {offsets = [0, 0], sizes = [8, 32], strides = [1, 1]} : vector<8x128xf32> to vector<8x32xf32>
    %304 = vector.extract_strided_slice %301 {offsets = [0, 32], sizes = [8, 32], strides = [1, 1]} : vector<8x128xf32> to vector<8x32xf32>
    %305 = vector.extract_strided_slice %302 {offsets = [0, 64], sizes = [8, 32], strides = [1, 1]} : vector<8x128xf32> to vector<8x32xf32>
    %306 = vector.extract_strided_slice %301 {offsets = [0, 96], sizes = [8, 32], strides = [1, 1]} : vector<8x128xf32> to vector<8x32xf32>
    %307 = arith.mulf %304, %290 : vector<8x32xf32>
    %308 = arith.mulf %303, %305 : vector<8x32xf32>
    %309 = arith.addf %307, %308 : vector<8x32xf32>
    %310 = math.tanh %309 : vector<8x32xf32>
    %311 = arith.mulf %306, %310 : vector<8x32xf32>
    %cst_43 = arith.constant dense<0.000000e+00> : vector<8x128xf32>
    %312 = tpu.matmul %273, %3, %cst_43 {dimension_numbers = #tpu.dot_dimension_numbers<[1], [0], [0], [1], [0, 0, 1, 1], [], []>} : vector<8x32xf32>, vector<32x128xf32>, vector<8x128xf32> -> vector<8x128xf32>
    %313 = vector.broadcast %7 : vector<1x128xf32> to vector<8x128xf32>
    %314 = arith.addf %312, %313 : vector<8x128xf32>
    %c0_44 = arith.constant 0 : index
    %c0_45 = arith.constant 0 : index
    %315 = vector.load %arg2[%c0_44, %c0_45] : memref<16x128xf32, #tpu.memory_space<vmem>>, vector<8x128xf32>
    tpu.vector_store %arg2[%c0_44, %c0_45], %314 {strides = array<i32>} : memref<16x128xf32, #tpu.memory_space<vmem>>, vector<8x128xf32>,
    %cst_46 = arith.constant dense<0.000000e+00> : vector<8x128xf32>
    %316 = tpu.matmul %311, %3, %cst_46 {dimension_numbers = #tpu.dot_dimension_numbers<[1], [0], [0], [1], [0, 0, 1, 1], [], []>} : vector<8x32xf32>, vector<32x128xf32>, vector<8x128xf32> -> vector<8x128xf32>
    %317 = vector.broadcast %7 : vector<1x128xf32> to vector<8x128xf32>
    %318 = arith.addf %316, %317 : vector<8x128xf32>
    %c8 = arith.constant 8 : index
    %c0_47 = arith.constant 0 : index
    %319 = vector.load %arg2[%c8, %c0_47] : memref<16x128xf32, #tpu.memory_space<vmem>>, vector<8x128xf32>
    tpu.vector_store %arg2[%c8, %c0_47], %318 {strides = array<i32>} : memref<16x128xf32, #tpu.memory_space<vmem>>, vector<8x128xf32>,
    return
  }
}

</mosaic_0001>

<llo_original>
// kernel: tpu_custom_call.1
$region0: #{tpu_custom_call.1}
  #allocation0 [shape = 'u32[]', space=smem, size = 0x4, offset = 0x4, fixed_abs, tag = 'smem constant byte address 0x4 - core index']
  #allocation1 [shape = 'u32[72,128]{1,0:T(1,128)}', space=vmem, size = 0x9000, scoped, tag = 'internal scratch']
  %s0 = inlined_call_operand.vmem [shape: f32[64,16], index: 0, kind: input, shape index: {}]
  %s1 = inlined_call_operand.hbm [shape: f32[152,128], index: 1, kind: input, shape index: {}]
  %s2 = inlined_call_operand.hbm [shape: f32[16,128], index: 2, kind: output, shape index: {}]
  %s3 = sld [smem:[#allocation0]]
  $region22: #{tpu_custom_call.1} parent=0
    _
  %s5 = ssub.s32 1, %s3
  %s6 = scalar_select 0, %s5, %s3
  $region1: #{tpu_custom_call.1} parent=0
    #allocation2 [shape = 'u8[77824]{0}', space=vmem, size = 0x13000, scoped, tag = 'input window, operand 1, single buffered']
    #allocation3 [shape = 's32[1]{0}', space=sflag, size = 0x4, scoped, tag = 'scoped memory for tpu_custom_call.1']
    #allocation4 [shape = 's32[1]{0}', space=sflag, size = 0x4, scoped, tag = 'scoped memory for tpu_custom_call.1']
    #allocation5 [shape = 'u8[8192]{0}', space=vmem, size = 0x2000, scoped, tag = 'output window, operand 0, single buffered']
    %7 = vsyncpa [#allocation3], 0
    %8 = vsyncpa [#allocation4], 0
    // Predicated region
    $region2: #{tpu_custom_call.1} parent=1 // pred_check
      _
    $region3: #{tpu_custom_call.1} parent=1 // pred_check_branch
      %10 = sbr.rel (0) target = $region5
    $region4: #{tpu_custom_call.1} parent=1 // pred_region
      _
    $region5: #{tpu_custom_call.1} parent=1 // pred_fallthru
      _
    // Predicated region
    $region6: #{tpu_custom_call.1} parent=1 // pred_check
      _
    $region7: #{tpu_custom_call.1} parent=1 // pred_check_branch
      %12 = sbr.rel (0) target = $region9
    $region8: #{tpu_custom_call.1} parent=1 // pred_region
      %14 = vsyncadd [#allocation3], 0
      %s15 = sshll.u32 %s1, 4
      %s16 = int_to_ptr.hbm [resolvable:$true] %s15
      %s17 = sshll.u32 [#allocation2], 4
      %s18 = int_to_ptr.vmem [resolvable:$true] %s17
      %23 = dma.hbm_to_vmem [thread:$0]  %s16, 2432, %s18, [#allocation3], 128, 128, 8
    $region9: #{tpu_custom_call.1} parent=1 // pred_fallthru
      _
    // Predicated region
    $region10: #{tpu_custom_call.1} parent=1 // pred_check
      _
    $region11: #{tpu_custom_call.1} parent=1 // pred_check_branch
      %25 = sbr.rel (0) target = $region13
    $region12: #{tpu_custom_call.1} parent=1 // pred_region
      %27 = dma.done [#allocation3], 2432
    $region13: #{tpu_custom_call.1} parent=1 // pred_fallthru
      _
    %v28 = vld [vmem:[#allocation2] sm:$0xff]
    %v29 = vld [vmem:[#allocation2 + $0x8] sm:$0xff]
    %v30 = vld [vmem:[#allocation2 + $0x10] sm:$0xff]
    %v31 = vld [vmem:[#allocation2 + $0x18] sm:$0xff]
    %v32 = vld [vmem:[#allocation2 + $0x20] sm:$0xff]
    %v33 = vld [vmem:[#allocation2 + $0x28] sm:$0xff]
    %v34 = vld [vmem:[#allocation2 + $0x30] sm:$0xff]
    %v35 = vld [vmem:[#allocation2 + $0x38] sm:$0xff]
    %v36 = vld [vmem:[#allocation2 + $0x40] sm:$0xff]
    %v37 = vld [vmem:[#allocation2 + $0x48] sm:$0xff]
    %v38 = vld [vmem:[#allocation2 + $0x50] sm:$0xff]
    %v39 = vld [vmem:[#allocation2 + $0x58] sm:$0xff]
    %v40 = vld [vmem:[#allocation2 + $0x60] sm:$0xff]
    %v41 = vld [vmem:[#allocation2 + $0x68] sm:$0xff]
    %v42 = vld [vmem:[#allocation2 + $0x70] sm:$0xff]
    %v43 = vld [vmem:[#allocation2 + $0x78] sm:$0xff]
    %v44 = vld [vmem:[#allocation2 + $0x80] sm:$0xff]
    %v45 = vld [vmem:[#allocation2 + $0x88] sm:$0xff]
    %v46 = vld [vmem:[#allocation2 + $0x90] sm:$0xff]
    %v47 = vld [vmem:[%s0] sm:$0xff]
    %v48 = vld [vmem:[%s0 + $0x8] sm:$0xff]
    %v49 = vld [vmem:[%s0 + $0x10] sm:$0xff]
    %v50 = vld [vmem:[%s0 + $0x18] sm:$0xff]
    %v51 = vld [vmem:[%s0 + $0x20] sm:$0xff]
    %v52 = vld [vmem:[%s0 + $0x28] sm:$0xff]
    %v53 = vld [vmem:[%s0 + $0x30] sm:$0xff]
    %v54 = vld [vmem:[%s0 + $0x38] sm:$0xff]
    %v55 = vperm.slane %v46, 0
    %vm56 = vcmask 130048
    %v58 = vsel %vm56, %v47, 0
    %v61 = vsel %vm56, %v48, 0
    %v64 = vsel %vm56, %v49, 0
    %v67 = vsel %vm56, %v50, 0
    %v70 = vsel %vm56, %v51, 0
    %v73 = vsel %vm56, %v52, 0
    %v76 = vsel %vm56, %v53, 0
    %v79 = vsel %vm56, %v54, 0
    %81 = vmatpush.msra.mxu0 0.0
    %82 = vmatpush.msra.mxu0 0.0
    %83 = vmatpush.msra.mxu0 0.0
    %84 = vmatpush.msra.mxu0 0.0
    %85 = vmatpush.msra.mxu0 0.0
    %86 = vmatpush.msra.mxu0 0.0
    %87 = vmatpush.msra.mxu0 0.0
    %88 = vmatpush.msra.mxu0 0.0
    %89 = vmatpush.msra.mxu0 0.0
    %90 = vmatpush.msra.mxu0 0.0
    %91 = vmatpush.msra.mxu0 0.0
    %92 = vmatpush.msra.mxu0 0.0
    %93 = vmatpush.msra.mxu0 0.0
    %94 = vmatpush.msra.mxu0 0.0
    %95 = vmatpush.msra.mxu0 %v29
    %96 = vmatpush.msra.mxu0 %v28
    %97 = vmatmul.f32.gmra.mxu0 %v58
    %v98 = vpop.f32.mrf.mxu0
    %v99 = vadd.f32 %v55, %v98
    %100 = vmatmul.f32.gmra.mxu0 %v61
    %v101 = vpop.f32.mrf.mxu0
    %v102 = vadd.f32 %v55, %v101
    %103 = vmatmul.f32.gmra.mxu0 %v64
    %v104 = vpop.f32.mrf.mxu0
    %v105 = vadd.f32 %v55, %v104
    %106 = vmatmul.f32.gmra.mxu0 %v67
    %v107 = vpop.f32.mrf.mxu0
    %v108 = vadd.f32 %v55, %v107
    %109 = vmatmul.f32.gmra.mxu0 %v70
    %v110 = vpop.f32.mrf.mxu0
    %v111 = vadd.f32 %v55, %v110
    %112 = vmatmul.f32.gmra.mxu0 %v73
    %v113 = vpop.f32.mrf.mxu0
    %v114 = vadd.f32 %v55, %v113
    %115 = vmatmul.f32.gmra.mxu0 %v76
    %v116 = vpop.f32.mrf.mxu0
    %v117 = vadd.f32 %v55, %v116
    %118 = vmatmul.f32.gmra.mxu0 %v79
    %v119 = vpop.f32.mrf.mxu0
    %v120 = vadd.f32 %v55, %v119
    %121 = vdwg.mxu0
    %vm122 = vcmask 261120
    %v124 = vsel %vm122, 0.0, 0
    %126 = vmatpush.msra.mxu0 0.0
    %127 = vmatpush.msra.mxu0 0.0
    %128 = vmatpush.msra.mxu0 0.0
    %129 = vmatpush.msra.mxu0 0.0
    %130 = vmatpush.msra.mxu0 0.0
    %131 = vmatpush.msra.mxu0 0.0
    %132 = vmatpush.msra.mxu0 0.0
    %133 = vmatpush.msra.mxu0 0.0
    %134 = vmatpush.msra.mxu0 0.0
    %135 = vmatpush.msra.mxu0 0.0
    %136 = vmatpush.msra.mxu0 0.0
    %137 = vmatpush.msra.mxu0 0.0
    %138 = vmatpush.msra.mxu0 %v33
    %139 = vmatpush.msra.mxu0 %v32
    %140 = vmatpush.msra.mxu0 %v31
    %141 = vmatpush.msra.mxu0 %v30
    %142 = vmatmul.f32.gmra.mxu0 %v124
    %v143 = vpop.f32.mrf.mxu0
    %v144 = vadd.f32 0.0, %v143
    %145 = vdwg.mxu0
    %v146 = vadd.f32 %v99, %v144
    %v147 = vxor.u32 %v146, 2147483648
    %v148 = vmul.f32 %v147, 1.442695
    %v149 = vpow.pop %v148
    %v150 = vadd.f32 %v149, 1.0
    %v151 = vrcp.pop %v150
    %v152 = vmul.f32 %v150, %v151
    %v153 = vsub.f32 1.0, %v152
    %v154 = vmul.f32 %v151, %v153
    %v155 = vadd.f32 %v151, %v154
    %vm156 = vweird.f32 %v150
    %vm157 = vweird.f32 %v151
    %vm158 = vmor %vm156, %vm157
    %v159 = vsel %vm158, %v151, %v155
    %v160 = vand.u32 2147483647, %v150
    %vm161 = vcmp.eq.f32.partialorder %v160, 8.507059e+37
    %v162 = vand.u32 %v150, 2147483648
    %v163 = vor.u32 1.1754944e-38, %v162
    %v164 = vsel %vm161, %v163, %v159
    %v165 = vmul.f32 1.0, %v164
    %v166 = vtanh.pop %v146
    %v167 = vmul.f32 %v165, 0.0
    %169 = vrot.lane.b32.xlu0 %v166, 64
    %v170 = vpop.permute.xlu0 %169
    %v172 = vmul.f32 %v165, %v170
    %174 = vrot.lane.b32.xlu0 %v172, 32
    %v175 = vpop.permute.xlu0 %174
    %v177 = vadd.f32 %v167, %v175
    %v178 = vtanh.pop %v177
    %180 = vrot.lane.b32.xlu0 %v178, 64
    %v181 = vpop.permute.xlu0 %180
    %v183 = vmul.f32 %v165, %v181
    %185 = vrot.lane.b32.xlu0 %v183, 32
    %v186 = vpop.permute.xlu0 %185
    %v187 = vsel %vm122, %v186, 0
    %189 = vmatpush.msra.mxu0 0.0
    %190 = vmatpush.msra.mxu0 0.0
    %191 = vmatpush.msra.mxu0 0.0
    %192 = vmatpush.msra.mxu0 0.0
    %193 = vmatpush.msra.mxu0 0.0
    %194 = vmatpush.msra.mxu0 0.0
    %195 = vmatpush.msra.mxu0 0.0
    %196 = vmatpush.msra.mxu0 0.0
    %197 = vmatpush.msra.mxu0 0.0
    %198 = vmatpush.msra.mxu0 0.0
    %199 = vmatpush.msra.mxu0 0.0
    %200 = vmatpush.msra.mxu0 0.0
    %201 = vmatpush.msra.mxu0 %v33
    %202 = vmatpush.msra.mxu0 %v32
    %203 = vmatpush.msra.mxu0 %v31
    %204 = vmatpush.msra.mxu0 %v30
    %205 = vmatmul.f32.gmra.mxu0 %v187
    %v206 = vpop.f32.mrf.mxu0
    %v207 = vadd.f32 0.0, %v206
    %208 = vdwg.mxu0
    %v209 = vadd.f32 %v102, %v207
    %v210 = vxor.u32 %v209, 2147483648
    %v211 = vmul.f32 %v210, 1.442695
    %v212 = vpow.pop %v211
    %v213 = vadd.f32 %v212, 1.0
    %v214 = vrcp.pop %v213
    %v215 = vmul.f32 %v213, %v214
    %v216 = vsub.f32 1.0, %v215
    %v217 = vmul.f32 %v214, %v216
    %v218 = vadd.f32 %v214, %v217
    %vm219 = vweird.f32 %v213
    %vm220 = vweird.f32 %v214
    %vm221 = vmor %vm219, %vm220
    %v222 = vsel %vm221, %v214, %v218
    %v223 = vand.u32 2147483647, %v213
    %vm224 = vcmp.eq.f32.partialorder %v223, 8.507059e+37
    %v225 = vand.u32 %v213, 2147483648
    %v226 = vor.u32 1.1754944e-38, %v225
    %v227 = vsel %vm224, %v226, %v222
    %v228 = vmul.f32 1.0, %v227
    %v229 = vtanh.pop %v209
    %v230 = vmul.f32 %v228, %v177
    %232 = vrot.lane.b32.xlu0 %v229, 64
    %v233 = vpop.permute.xlu0 %232
    %v235 = vmul.f32 %v228, %v233
    %237 = vrot.lane.b32.xlu0 %v235, 32
    %v238 = vpop.permute.xlu0 %237
    %v240 = vadd.f32 %v230, %v238
    %v241 = vtanh.pop %v240
    %243 = vrot.lane.b32.xlu0 %v241, 64
    %v244 = vpop.permute.xlu0 %243
    %v246 = vmul.f32 %v228, %v244
    %v248 = vsel %vm122, %v186, 0.0
    %v249 = vperm.slane %v46, 1
    %vm250 = vcmask 523264
    %v252 = vsel %vm250, %v248, 0
    %254 = vmatpush.msra.mxu0 0.0
    %255 = vmatpush.msra.mxu0 0.0
    %256 = vmatpush.msra.mxu0 0.0
    %257 = vmatpush.msra.mxu0 0.0
    %258 = vmatpush.msra.mxu0 0.0
    %259 = vmatpush.msra.mxu0 0.0
    %260 = vmatpush.msra.mxu0 0.0
    %261 = vmatpush.msra.mxu0 0.0
    %262 = vmatpush.msra.mxu0 %v41
    %263 = vmatpush.msra.mxu0 %v40
    %264 = vmatpush.msra.mxu0 %v39
    %265 = vmatpush.msra.mxu0 %v38
    %266 = vmatpush.msra.mxu0 %v37
    %267 = vmatpush.msra.mxu0 %v36
    %268 = vmatpush.msra.mxu0 %v35
    %269 = vmatpush.msra.mxu0 %v34
    %270 = vmatmul.f32.gmra.mxu0 %v252
    %v271 = vpop.f32.mrf.mxu0
    %v272 = vadd.f32 %v249, %v271
    %273 = vdwg.mxu0
    %v274 = vxor.u32 %v272, 2147483648
    %v275 = vmul.f32 %v274, 1.442695
    %v276 = vpow.pop %v275
    %v277 = vadd.f32 %v276, 1.0
    %v278 = vrcp.pop %v277
    %v279 = vmul.f32 %v277, %v278
    %v280 = vsub.f32 1.0, %v279
    %v281 = vmul.f32 %v278, %v280
    %v282 = vadd.f32 %v278, %v281
    %vm283 = vweird.f32 %v277
    %vm284 = vweird.f32 %v278
    %vm285 = vmor %vm283, %vm284
    %v286 = vsel %vm285, %v278, %v282
    %v287 = vand.u32 2147483647, %v277
    %vm288 = vcmp.eq.f32.partialorder %v287, 8.507059e+37
    %v289 = vand.u32 %v277, 2147483648
    %v290 = vor.u32 1.1754944e-38, %v289
    %v291 = vsel %vm288, %v290, %v286
    %v292 = vmul.f32 1.0, %v291
    %v293 = vtanh.pop %v272
    %v294 = vmul.f32 %v292, 0.0
    %296 = vrot.lane.b32.xlu0 %v293, 64
    %v297 = vpop.permute.xlu0 %296
    %v299 = vmul.f32 %v292, %v297
    %301 = vrot.lane.b32.xlu0 %v299, 32
    %v302 = vpop.permute.xlu0 %301
    %v304 = vadd.f32 %v294, %v302
    %v305 = vtanh.pop %v304
    %307 = vrot.lane.b32.xlu0 %v305, 64
    %v308 = vpop.permute.xlu0 %307
    %v310 = vmul.f32 %v292, %v308
    %312 = vrot.lane.b32.xlu0 %v246, 32
    %v313 = vpop.permute.xlu0 %312
    %v314 = vsel %vm122, %v313, 0
    %316 = vmatpush.msra.mxu0 0.0
    %317 = vmatpush.msra.mxu0 0.0
    %318 = vmatpush.msra.mxu0 0.0
    %319 = vmatpush.msra.mxu0 0.0
    %320 = vmatpush.msra.mxu0 0.0
    %321 = vmatpush.msra.mxu0 0.0
    %322 = vmatpush.msra.mxu0 0.0
    %323 = vmatpush.msra.mxu0 0.0
    %324 = vmatpush.msra.mxu0 0.0
    %325 = vmatpush.msra.mxu0 0.0
    %326 = vmatpush.msra.mxu0 0.0
    %327 = vmatpush.msra.mxu0 0.0
    %328 = vmatpush.msra.mxu0 %v33
    %329 = vmatpush.msra.mxu0 %v32
    %330 = vmatpush.msra.mxu0 %v31
    %331 = vmatpush.msra.mxu0 %v30
    %332 = vmatmul.f32.gmra.mxu0 %v314
    %v333 = vpop.f32.mrf.mxu0
    %v334 = vadd.f32 0.0, %v333
    %335 = vdwg.mxu0
    %v336 = vadd.f32 %v105, %v334
    %v337 = vxor.u32 %v336, 2147483648
    %v338 = vmul.f32 %v337, 1.442695
    %v339 = vpow.pop %v338
    %v340 = vadd.f32 %v339, 1.0
    %v341 = vrcp.pop %v340
    %v342 = vmul.f32 %v340, %v341
    %v343 = vsub.f32 1.0, %v342
    %v344 = vmul.f32 %v341, %v343
    %v345 = vadd.f32 %v341, %v344
    %vm346 = vweird.f32 %v340
    %vm347 = vweird.f32 %v341
    %vm348 = vmor %vm346, %vm347
    %v349 = vsel %vm348, %v341, %v345
    %v350 = vand.u32 2147483647, %v340
    %vm351 = vcmp.eq.f32.partialorder %v350, 8.507059e+37
    %v352 = vand.u32 %v340, 2147483648
    %v353 = vor.u32 1.1754944e-38, %v352
    %v354 = vsel %vm351, %v353, %v349
    %v355 = vmul.f32 1.0, %v354
    %v356 = vtanh.pop %v336
    %v357 = vmul.f32 %v355, %v240
    %359 = vrot.lane.b32.xlu0 %v356, 64
    %v360 = vpop.permute.xlu0 %359
    %v362 = vmul.f32 %v355, %v360
    %364 = vrot.lane.b32.xlu0 %v362, 32
    %v365 = vpop.permute.xlu0 %364
    %v367 = vadd.f32 %v357, %v365
    %v368 = vtanh.pop %v367
    %370 = vrot.lane.b32.xlu0 %v368, 64
    %v371 = vpop.permute.xlu0 %370
    %v373 = vmul.f32 %v355, %v371
    %376 = vrot.lane.b32.xlu0 %v310, 64
    %v377 = vpop.permute.xlu0 %376
    %v379 = vsel %vm122, %v313, %v377
    %v381 = vsel %vm250, %v379, 0
    %383 = vmatpush.msra.mxu0 0.0
    %384 = vmatpush.msra.mxu0 0.0
    %385 = vmatpush.msra.mxu0 0.0
    %386 = vmatpush.msra.mxu0 0.0
    %387 = vmatpush.msra.mxu0 0.0
    %388 = vmatpush.msra.mxu0 0.0
    %389 = vmatpush.msra.mxu0 0.0
    %390 = vmatpush.msra.mxu0 0.0
    %391 = vmatpush.msra.mxu0 %v41
    %392 = vmatpush.msra.mxu0 %v40
    %393 = vmatpush.msra.mxu0 %v39
    %394 = vmatpush.msra.mxu0 %v38
    %395 = vmatpush.msra.mxu0 %v37
    %396 = vmatpush.msra.mxu0 %v36
    %397 = vmatpush.msra.mxu0 %v35
    %398 = vmatpush.msra.mxu0 %v34
    %399 = vmatmul.f32.gmra.mxu0 %v381
    %v400 = vpop.f32.mrf.mxu0
    %v401 = vadd.f32 %v249, %v400
    %402 = vdwg.mxu0
    %v403 = vxor.u32 %v401, 2147483648
    %v404 = vmul.f32 %v403, 1.442695
    %v405 = vpow.pop %v404
    %v406 = vadd.f32 %v405, 1.0
    %v407 = vrcp.pop %v406
    %v408 = vmul.f32 %v406, %v407
    %v409 = vsub.f32 1.0, %v408
    %v410 = vmul.f32 %v407, %v409
    %v411 = vadd.f32 %v407, %v410
    %vm412 = vweird.f32 %v406
    %vm413 = vweird.f32 %v407
    %vm414 = vmor %vm412, %vm413
    %v415 = vsel %vm414, %v407, %v411
    %v416 = vand.u32 2147483647, %v406
    %vm417 = vcmp.eq.f32.partialorder %v416, 8.507059e+37
    %v418 = vand.u32 %v406, 2147483648
    %v419 = vor.u32 1.1754944e-38, %v418
    %v420 = vsel %vm417, %v419, %v415
    %v421 = vmul.f32 1.0, %v420
    %v422 = vtanh.pop %v401
    %v423 = vmul.f32 %v421, %v304
    %425 = vrot.lane.b32.xlu0 %v422, 64
    %v426 = vpop.permute.xlu0 %425
    %v428 = vmul.f32 %v421, %v426
    %430 = vrot.lane.b32.xlu0 %v428, 32
    %v431 = vpop.permute.xlu0 %430
    %v433 = vadd.f32 %v423, %v431
    %v434 = vtanh.pop %v433
    %436 = vrot.lane.b32.xlu0 %v434, 64
    %v437 = vpop.permute.xlu0 %436
    %v439 = vmul.f32 %v421, %v437
    %441 = vrot.lane.b32.xlu0 %v373, 32
    %v442 = vpop.permute.xlu0 %441
    %v443 = vsel %vm122, %v442, 0
    %445 = vmatpush.msra.mxu0 0.0
    %446 = vmatpush.msra.mxu0 0.0
    %447 = vmatpush.msra.mxu0 0.0
    %448 = vmatpush.msra.mxu0 0.0
    %449 = vmatpush.msra.mxu0 0.0
    %450 = vmatpush.msra.mxu0 0.0
    %451 = vmatpush.msra.mxu0 0.0
    %452 = vmatpush.msra.mxu0 0.0
    %453 = vmatpush.msra.mxu0 0.0
    %454 = vmatpush.msra.mxu0 0.0
    %455 = vmatpush.msra.mxu0 0.0
    %456 = vmatpush.msra.mxu0 0.0
    %457 = vmatpush.msra.mxu0 %v33
    %458 = vmatpush.msra.mxu0 %v32
    %459 = vmatpush.msra.mxu0 %v31
    %460 = vmatpush.msra.mxu0 %v30
    %461 = vmatmul.f32.gmra.mxu0 %v443
    %v462 = vpop.f32.mrf.mxu0
    %v463 = vadd.f32 0.0, %v462
    %464 = vdwg.mxu0
    %v465 = vadd.f32 %v108, %v463
    %v466 = vxor.u32 %v465, 2147483648
    %v467 = vmul.f32 %v466, 1.442695
    %v468 = vpow.pop %v467
    %v469 = vadd.f32 %v468, 1.0
    %v470 = vrcp.pop %v469
    %v471 = vmul.f32 %v469, %v470
    %v472 = vsub.f32 1.0, %v471
    %v473 = vmul.f32 %v470, %v472
    %v474 = vadd.f32 %v470, %v473
    %vm475 = vweird.f32 %v469
    %vm476 = vweird.f32 %v470
    %vm477 = vmor %vm475, %vm476
    %v478 = vsel %vm477, %v470, %v474
    %v479 = vand.u32 2147483647, %v469
    %vm480 = vcmp.eq.f32.partialorder %v479, 8.507059e+37
    %v481 = vand.u32 %v469, 2147483648
    %v482 = vor.u32 1.1754944e-38, %v481
    %v483 = vsel %vm480, %v482, %v478
    %v484 = vmul.f32 1.0, %v483
    %v485 = vtanh.pop %v465
    %v486 = vmul.f32 %v484, %v367
    %488 = vrot.lane.b32.xlu0 %v485, 64
    %v489 = vpop.permute.xlu0 %488
    %v491 = vmul.f32 %v484, %v489
    %493 = vrot.lane.b32.xlu0 %v491, 32
    %v494 = vpop.permute.xlu0 %493
    %v496 = vadd.f32 %v486, %v494
    %v497 = vtanh.pop %v496
    %499 = vrot.lane.b32.xlu0 %v497, 64
    %v500 = vpop.permute.xlu0 %499
    %v502 = vmul.f32 %v484, %v500
    %505 = vrot.lane.b32.xlu0 %v439, 64
    %v506 = vpop.permute.xlu0 %505
    %v508 = vsel %vm122, %v442, %v506
    %v510 = vsel %vm250, %v508, 0
    %512 = vmatpush.msra.mxu0 0.0
    %513 = vmatpush.msra.mxu0 0.0
    %514 = vmatpush.msra.mxu0 0.0
    %515 = vmatpush.msra.mxu0 0.0
    %516 = vmatpush.msra.mxu0 0.0
    %517 = vmatpush.msra.mxu0 0.0
    %518 = vmatpush.msra.mxu0 0.0
    %519 = vmatpush.msra.mxu0 0.0
    %520 = vmatpush.msra.mxu0 %v41
    %521 = vmatpush.msra.mxu0 %v40
    %522 = vmatpush.msra.mxu0 %v39
    %523 = vmatpush.msra.mxu0 %v38
    %524 = vmatpush.msra.mxu0 %v37
    %525 = vmatpush.msra.mxu0 %v36
    %526 = vmatpush.msra.mxu0 %v35
    %527 = vmatpush.msra.mxu0 %v34
    %528 = vmatmul.f32.gmra.mxu0 %v510
    %v529 = vpop.f32.mrf.mxu0
    %v530 = vadd.f32 %v249, %v529
    %531 = vdwg.mxu0
    %v532 = vxor.u32 %v530, 2147483648
    %v533 = vmul.f32 %v532, 1.442695
    %v534 = vpow.pop %v533
    %v535 = vadd.f32 %v534, 1.0
    %v536 = vrcp.pop %v535
    %v537 = vmul.f32 %v535, %v536
    %v538 = vsub.f32 1.0, %v537
    %v539 = vmul.f32 %v536, %v538
    %v540 = vadd.f32 %v536, %v539
    %vm541 = vweird.f32 %v535
    %vm542 = vweird.f32 %v536
    %vm543 = vmor %vm541, %vm542
    %v544 = vsel %vm543, %v536, %v540
    %v545 = vand.u32 2147483647, %v535
    %vm546 = vcmp.eq.f32.partialorder %v545, 8.507059e+37
    %v547 = vand.u32 %v535, 2147483648
    %v548 = vor.u32 1.1754944e-38, %v547
    %v549 = vsel %vm546, %v548, %v544
    %v550 = vmul.f32 1.0, %v549
    %v551 = vtanh.pop %v530
    %v552 = vmul.f32 %v550, %v433
    %554 = vrot.lane.b32.xlu0 %v551, 64
    %v555 = vpop.permute.xlu0 %554
    %v557 = vmul.f32 %v550, %v555
    %559 = vrot.lane.b32.xlu0 %v557, 32
    %v560 = vpop.permute.xlu0 %559
    %v562 = vadd.f32 %v552, %v560
    %v563 = vtanh.pop %v562
    %565 = vrot.lane.b32.xlu0 %v563, 64
    %v566 = vpop.permute.xlu0 %565
    %v568 = vmul.f32 %v550, %v566
    %570 = vrot.lane.b32.xlu0 %v502, 32
    %v571 = vpop.permute.xlu0 %570
    %v572 = vsel %vm122, %v571, 0
    %574 = vmatpush.msra.mxu0 0.0
    %575 = vmatpush.msra.mxu0 0.0
    %576 = vmatpush.msra.mxu0 0.0
    %577 = vmatpush.msra.mxu0 0.0
    %578 = vmatpush.msra.mxu0 0.0
    %579 = vmatpush.msra.mxu0 0.0
    %580 = vmatpush.msra.mxu0 0.0
    %581 = vmatpush.msra.mxu0 0.0
    %582 = vmatpush.msra.mxu0 0.0
    %583 = vmatpush.msra.mxu0 0.0
    %584 = vmatpush.msra.mxu0 0.0
    %585 = vmatpush.msra.mxu0 0.0
    %586 = vmatpush.msra.mxu0 %v33
    %587 = vmatpush.msra.mxu0 %v32
    %588 = vmatpush.msra.mxu0 %v31
    %589 = vmatpush.msra.mxu0 %v30
    %590 = vmatmul.f32.gmra.mxu0 %v572
    %v591 = vpop.f32.mrf.mxu0
    %v592 = vadd.f32 0.0, %v591
    %593 = vdwg.mxu0
    %v594 = vadd.f32 %v111, %v592
    %v595 = vxor.u32 %v594, 2147483648
    %v596 = vmul.f32 %v595, 1.442695
    %v597 = vpow.pop %v596
    %v598 = vadd.f32 %v597, 1.0
    %v599 = vrcp.pop %v598
    %v600 = vmul.f32 %v598, %v599
    %v601 = vsub.f32 1.0, %v600
    %v602 = vmul.f32 %v599, %v601
    %v603 = vadd.f32 %v599, %v602
    %vm604 = vweird.f32 %v598
    %vm605 = vweird.f32 %v599
    %vm606 = vmor %vm604, %vm605
    %v607 = vsel %vm606, %v599, %v603
    %v608 = vand.u32 2147483647, %v598
    %vm609 = vcmp.eq.f32.partialorder %v608, 8.507059e+37
    %v610 = vand.u32 %v598, 2147483648
    %v611 = vor.u32 1.1754944e-38, %v610
    %v612 = vsel %vm609, %v611, %v607
    %v613 = vmul.f32 1.0, %v612
    %v614 = vtanh.pop %v594
    %v615 = vmul.f32 %v613, %v496
    %617 = vrot.lane.b32.xlu0 %v614, 64
    %v618 = vpop.permute.xlu0 %617
    %v620 = vmul.f32 %v613, %v618
    %622 = vrot.lane.b32.xlu0 %v620, 32
    %v623 = vpop.permute.xlu0 %622
    %v625 = vadd.f32 %v615, %v623
    %v626 = vtanh.pop %v625
    %628 = vrot.lane.b32.xlu0 %v626, 64
    %v629 = vpop.permute.xlu0 %628
    %v631 = vmul.f32 %v613, %v629
    %634 = vrot.lane.b32.xlu0 %v568, 64
    %v635 = vpop.permute.xlu0 %634
    %v637 = vsel %vm122, %v571, %v635
    %v639 = vsel %vm250, %v637, 0
    %641 = vmatpush.msra.mxu0 0.0
    %642 = vmatpush.msra.mxu0 0.0
    %643 = vmatpush.msra.mxu0 0.0
    %644 = vmatpush.msra.mxu0 0.0
    %645 = vmatpush.msra.mxu0 0.0
    %646 = vmatpush.msra.mxu0 0.0
    %647 = vmatpush.msra.mxu0 0.0
    %648 = vmatpush.msra.mxu0 0.0
    %649 = vmatpush.msra.mxu0 %v41
    %650 = vmatpush.msra.mxu0 %v40
    %651 = vmatpush.msra.mxu0 %v39
    %652 = vmatpush.msra.mxu0 %v38
    %653 = vmatpush.msra.mxu0 %v37
    %654 = vmatpush.msra.mxu0 %v36
    %655 = vmatpush.msra.mxu0 %v35
    %656 = vmatpush.msra.mxu0 %v34
    %657 = vmatmul.f32.gmra.mxu0 %v639
    %v658 = vpop.f32.mrf.mxu0
    %v659 = vadd.f32 %v249, %v658
    %660 = vdwg.mxu0
    %v661 = vxor.u32 %v659, 2147483648
    %v662 = vmul.f32 %v661, 1.442695
    %v663 = vpow.pop %v662
    %v664 = vadd.f32 %v663, 1.0
    %v665 = vrcp.pop %v664
    %v666 = vmul.f32 %v664, %v665
    %v667 = vsub.f32 1.0, %v666
    %v668 = vmul.f32 %v665, %v667
    %v669 = vadd.f32 %v665, %v668
    %vm670 = vweird.f32 %v664
    %vm671 = vweird.f32 %v665
    %vm672 = vmor %vm670, %vm671
    %v673 = vsel %vm672, %v665, %v669
    %v674 = vand.u32 2147483647, %v664
    %vm675 = vcmp.eq.f32.partialorder %v674, 8.507059e+37
    %v676 = vand.u32 %v664, 2147483648
    %v677 = vor.u32 1.1754944e-38, %v676
    %v678 = vsel %vm675, %v677, %v673
    %v679 = vmul.f32 1.0, %v678
    %v680 = vtanh.pop %v659
    %v681 = vmul.f32 %v679, %v562
    %683 = vrot.lane.b32.xlu0 %v680, 64
    %v684 = vpop.permute.xlu0 %683
    %v686 = vmul.f32 %v679, %v684
    %688 = vrot.lane.b32.xlu0 %v686, 32
    %v689 = vpop.permute.xlu0 %688
    %v691 = vadd.f32 %v681, %v689
    %v692 = vtanh.pop %v691
    %694 = vrot.lane.b32.xlu0 %v692, 64
    %v695 = vpop.permute.xlu0 %694
    %v697 = vmul.f32 %v679, %v695
    %699 = vrot.lane.b32.xlu0 %v631, 32
    %v700 = vpop.permute.xlu0 %699
    %v701 = vsel %vm122, %v700, 0
    %703 = vmatpush.msra.mxu0 0.0
    %704 = vmatpush.msra.mxu0 0.0
    %705 = vmatpush.msra.mxu0 0.0
    %706 = vmatpush.msra.mxu0 0.0
    %707 = vmatpush.msra.mxu0 0.0
    %708 = vmatpush.msra.mxu0 0.0
    %709 = vmatpush.msra.mxu0 0.0
    %710 = vmatpush.msra.mxu0 0.0
    %711 = vmatpush.msra.mxu0 0.0
    %712 = vmatpush.msra.mxu0 0.0
    %713 = vmatpush.msra.mxu0 0.0
    %714 = vmatpush.msra.mxu0 0.0
    %715 = vmatpush.msra.mxu0 %v33
    %716 = vmatpush.msra.mxu0 %v32
    %717 = vmatpush.msra.mxu0 %v31
    %718 = vmatpush.msra.mxu0 %v30
    %719 = vmatmul.f32.gmra.mxu0 %v701
    %v720 = vpop.f32.mrf.mxu0
    %v721 = vadd.f32 0.0, %v720
    %722 = vdwg.mxu0
    %v723 = vadd.f32 %v114, %v721
    %v724 = vxor.u32 %v723, 2147483648
    %v725 = vmul.f32 %v724, 1.442695
    %v726 = vpow.pop %v725
    %v727 = vadd.f32 %v726, 1.0
    %v728 = vrcp.pop %v727
    %v729 = vmul.f32 %v727, %v728
    %v730 = vsub.f32 1.0, %v729
    %v731 = vmul.f32 %v728, %v730
    %v732 = vadd.f32 %v728, %v731
    %vm733 = vweird.f32 %v727
    %vm734 = vweird.f32 %v728
    %vm735 = vmor %vm733, %vm734
    %v736 = vsel %vm735, %v728, %v732
    %v737 = vand.u32 2147483647, %v727
    %vm738 = vcmp.eq.f32.partialorder %v737, 8.507059e+37
    %v739 = vand.u32 %v727, 2147483648
    %v740 = vor.u32 1.1754944e-38, %v739
    %v741 = vsel %vm738, %v740, %v736
    %v742 = vmul.f32 1.0, %v741
    %v743 = vtanh.pop %v723
    %v744 = vmul.f32 %v742, %v625
    %746 = vrot.lane.b32.xlu0 %v743, 64
    %v747 = vpop.permute.xlu0 %746
    %v749 = vmul.f32 %v742, %v747
    %751 = vrot.lane.b32.xlu0 %v749, 32
    %v752 = vpop.permute.xlu0 %751
    %v754 = vadd.f32 %v744, %v752
    %v755 = vtanh.pop %v754
    %757 = vrot.lane.b32.xlu0 %v755, 64
    %v758 = vpop.permute.xlu0 %757
    %v760 = vmul.f32 %v742, %v758
    %763 = vrot.lane.b32.xlu0 %v697, 64
    %v764 = vpop.permute.xlu0 %763
    %v766 = vsel %vm122, %v700, %v764
    %v768 = vsel %vm250, %v766, 0
    %770 = vmatpush.msra.mxu0 0.0
    %771 = vmatpush.msra.mxu0 0.0
    %772 = vmatpush.msra.mxu0 0.0
    %773 = vmatpush.msra.mxu0 0.0
    %774 = vmatpush.msra.mxu0 0.0
    %775 = vmatpush.msra.mxu0 0.0
    %776 = vmatpush.msra.mxu0 0.0
    %777 = vmatpush.msra.mxu0 0.0
    %778 = vmatpush.msra.mxu0 %v41
    %779 = vmatpush.msra.mxu0 %v40
    %780 = vmatpush.msra.mxu0 %v39
    %781 = vmatpush.msra.mxu0 %v38
    %782 = vmatpush.msra.mxu0 %v37
    %783 = vmatpush.msra.mxu0 %v36
    %784 = vmatpush.msra.mxu0 %v35
    %785 = vmatpush.msra.mxu0 %v34
    %786 = vmatmul.f32.gmra.mxu0 %v768
    %v787 = vpop.f32.mrf.mxu0
    %v788 = vadd.f32 %v249, %v787
    %789 = vdwg.mxu0
    %v790 = vxor.u32 %v788, 2147483648
    %v791 = vmul.f32 %v790, 1.442695
    %v792 = vpow.pop %v791
    %v793 = vadd.f32 %v792, 1.0
    %v794 = vrcp.pop %v793
    %v795 = vmul.f32 %v793, %v794
    %v796 = vsub.f32 1.0, %v795
    %v797 = vmul.f32 %v794, %v796
    %v798 = vadd.f32 %v794, %v797
    %vm799 = vweird.f32 %v793
    %vm800 = vweird.f32 %v794
    %vm801 = vmor %vm799, %vm800
    %v802 = vsel %vm801, %v794, %v798
    %v803 = vand.u32 2147483647, %v793
    %vm804 = vcmp.eq.f32.partialorder %v803, 8.507059e+37
    %v805 = vand.u32 %v793, 2147483648
    %v806 = vor.u32 1.1754944e-38, %v805
    %v807 = vsel %vm804, %v806, %v802
    %v808 = vmul.f32 1.0, %v807
    %v809 = vtanh.pop %v788
    %v810 = vmul.f32 %v808, %v691
    %812 = vrot.lane.b32.xlu0 %v809, 64
    %v813 = vpop.permute.xlu0 %812
    %v815 = vmul.f32 %v808, %v813
    %817 = vrot.lane.b32.xlu0 %v815, 32
    %v818 = vpop.permute.xlu0 %817
    %v820 = vadd.f32 %v810, %v818
    %v821 = vtanh.pop %v820
    %823 = vrot.lane.b32.xlu0 %v821, 64
    %v824 = vpop.permute.xlu0 %823
    %v826 = vmul.f32 %v808, %v824
    %828 = vrot.lane.b32.xlu0 %v760, 32
    %v829 = vpop.permute.xlu0 %828
    %v830 = vsel %vm122, %v829, 0
    %832 = vmatpush.msra.mxu0 0.0
    %833 = vmatpush.msra.mxu0 0.0
    %834 = vmatpush.msra.mxu0 0.0
    %835 = vmatpush.msra.mxu0 0.0
    %836 = vmatpush.msra.mxu0 0.0
    %837 = vmatpush.msra.mxu0 0.0
    %838 = vmatpush.msra.mxu0 0.0
    %839 = vmatpush.msra.mxu0 0.0
    %840 = vmatpush.msra.mxu0 0.0
    %841 = vmatpush.msra.mxu0 0.0
    %842 = vmatpush.msra.mxu0 0.0
    %843 = vmatpush.msra.mxu0 0.0
    %844 = vmatpush.msra.mxu0 %v33
    %845 = vmatpush.msra.mxu0 %v32
    %846 = vmatpush.msra.mxu0 %v31
    %847 = vmatpush.msra.mxu0 %v30
    %848 = vmatmul.f32.gmra.mxu0 %v830
    %v849 = vpop.f32.mrf.mxu0
    %v850 = vadd.f32 0.0, %v849
    %851 = vdwg.mxu0
    %v852 = vadd.f32 %v117, %v850
    %v853 = vxor.u32 %v852, 2147483648
    %v854 = vmul.f32 %v853, 1.442695
    %v855 = vpow.pop %v854
    %v856 = vadd.f32 %v855, 1.0
    %v857 = vrcp.pop %v856
    %v858 = vmul.f32 %v856, %v857
    %v859 = vsub.f32 1.0, %v858
    %v860 = vmul.f32 %v857, %v859
    %v861 = vadd.f32 %v857, %v860
    %vm862 = vweird.f32 %v856
    %vm863 = vweird.f32 %v857
    %vm864 = vmor %vm862, %vm863
    %v865 = vsel %vm864, %v857, %v861
    %v866 = vand.u32 2147483647, %v856
    %vm867 = vcmp.eq.f32.partialorder %v866, 8.507059e+37
    %v868 = vand.u32 %v856, 2147483648
    %v869 = vor.u32 1.1754944e-38, %v868
    %v870 = vsel %vm867, %v869, %v865
    %v871 = vmul.f32 1.0, %v870
    %v872 = vtanh.pop %v852
    %v873 = vmul.f32 %v871, %v754
    %875 = vrot.lane.b32.xlu0 %v872, 64
    %v876 = vpop.permute.xlu0 %875
    %v878 = vmul.f32 %v871, %v876
    %880 = vrot.lane.b32.xlu0 %v878, 32
    %v881 = vpop.permute.xlu0 %880
    %v883 = vadd.f32 %v873, %v881
    %v884 = vtanh.pop %v883
    %886 = vrot.lane.b32.xlu0 %v884, 64
    %v887 = vpop.permute.xlu0 %886
    %v889 = vmul.f32 %v871, %v887
    %892 = vrot.lane.b32.xlu0 %v826, 64
    %v893 = vpop.permute.xlu0 %892
    %v895 = vsel %vm122, %v829, %v893
    %v897 = vsel %vm250, %v895, 0
    %899 = vmatpush.msra.mxu0 0.0
    %900 = vmatpush.msra.mxu0 0.0
    %901 = vmatpush.msra.mxu0 0.0
    %902 = vmatpush.msra.mxu0 0.0
    %903 = vmatpush.msra.mxu0 0.0
    %904 = vmatpush.msra.mxu0 0.0
    %905 = vmatpush.msra.mxu0 0.0
    %906 = vmatpush.msra.mxu0 0.0
    %907 = vmatpush.msra.mxu0 %v41
    %908 = vmatpush.msra.mxu0 %v40
    %909 = vmatpush.msra.mxu0 %v39
    %910 = vmatpush.msra.mxu0 %v38
    %911 = vmatpush.msra.mxu0 %v37
    %912 = vmatpush.msra.mxu0 %v36
    %913 = vmatpush.msra.mxu0 %v35
    %914 = vmatpush.msra.mxu0 %v34
    %915 = vmatmul.f32.gmra.mxu0 %v897
    %v916 = vpop.f32.mrf.mxu0
    %v917 = vadd.f32 %v249, %v916
    %918 = vdwg.mxu0
    %v919 = vxor.u32 %v917, 2147483648
    %v920 = vmul.f32 %v919, 1.442695
    %v921 = vpow.pop %v920
    %v922 = vadd.f32 %v921, 1.0
    %v923 = vrcp.pop %v922
    %v924 = vmul.f32 %v922, %v923
    %v925 = vsub.f32 1.0, %v924
    %v926 = vmul.f32 %v923, %v925
    %v927 = vadd.f32 %v923, %v926
    %vm928 = vweird.f32 %v922
    %vm929 = vweird.f32 %v923
    %vm930 = vmor %vm928, %vm929
    %v931 = vsel %vm930, %v923, %v927
    %v932 = vand.u32 2147483647, %v922
    %vm933 = vcmp.eq.f32.partialorder %v932, 8.507059e+37
    %v934 = vand.u32 %v922, 2147483648
    %v935 = vor.u32 1.1754944e-38, %v934
    %v936 = vsel %vm933, %v935, %v931
    %v937 = vmul.f32 1.0, %v936
    %v938 = vtanh.pop %v917
    %v939 = vmul.f32 %v937, %v820
    %941 = vrot.lane.b32.xlu0 %v938, 64
    %v942 = vpop.permute.xlu0 %941
    %v944 = vmul.f32 %v937, %v942
    %946 = vrot.lane.b32.xlu0 %v944, 32
    %v947 = vpop.permute.xlu0 %946
    %v949 = vadd.f32 %v939, %v947
    %v950 = vtanh.pop %v949
    %952 = vrot.lane.b32.xlu0 %v950, 64
    %v953 = vpop.permute.xlu0 %952
    %v955 = vmul.f32 %v937, %v953
    %957 = vrot.lane.b32.xlu0 %v889, 32
    %v958 = vpop.permute.xlu0 %957
    %v959 = vsel %vm122, %v958, 0
    %961 = vmatpush.msra.mxu0 0.0
    %962 = vmatpush.msra.mxu0 0.0
    %963 = vmatpush.msra.mxu0 0.0
    %964 = vmatpush.msra.mxu0 0.0
    %965 = vmatpush.msra.mxu0 0.0
    %966 = vmatpush.msra.mxu0 0.0
    %967 = vmatpush.msra.mxu0 0.0
    %968 = vmatpush.msra.mxu0 0.0
    %969 = vmatpush.msra.mxu0 0.0
    %970 = vmatpush.msra.mxu0 0.0
    %971 = vmatpush.msra.mxu0 0.0
    %972 = vmatpush.msra.mxu0 0.0
    %973 = vmatpush.msra.mxu0 %v33
    %974 = vmatpush.msra.mxu0 %v32
    %975 = vmatpush.msra.mxu0 %v31
    %976 = vmatpush.msra.mxu0 %v30
    %977 = vmatmul.f32.gmra.mxu0 %v959
    %v978 = vpop.f32.mrf.mxu0
    %v979 = vadd.f32 0.0, %v978
    %980 = vdwg.mxu0
    %v981 = vadd.f32 %v120, %v979
    %v982 = vxor.u32 %v981, 2147483648
    %v983 = vmul.f32 %v982, 1.442695
    %v984 = vpow.pop %v983
    %v985 = vadd.f32 %v984, 1.0
    %v986 = vrcp.pop %v985
    %v987 = vmul.f32 %v985, %v986
    %v988 = vsub.f32 1.0, %v987
    %v989 = vmul.f32 %v986, %v988
    %v990 = vadd.f32 %v986, %v989
    %vm991 = vweird.f32 %v985
    %vm992 = vweird.f32 %v986
    %vm993 = vmor %vm991, %vm992
    %v994 = vsel %vm993, %v986, %v990
    %v995 = vand.u32 2147483647, %v985
    %vm996 = vcmp.eq.f32.partialorder %v995, 8.507059e+37
    %v997 = vand.u32 %v985, 2147483648
    %v998 = vor.u32 1.1754944e-38, %v997
    %v999 = vsel %vm996, %v998, %v994
    %v1000 = vmul.f32 1.0, %v999
    %v1001 = vtanh.pop %v981
    %v1002 = vmul.f32 %v1000, %v883
    %1004 = vrot.lane.b32.xlu0 %v1001, 64
    %v1005 = vpop.permute.xlu0 %1004
    %v1007 = vmul.f32 %v1000, %v1005
    %1009 = vrot.lane.b32.xlu0 %v1007, 32
    %v1010 = vpop.permute.xlu0 %1009
    %v1012 = vadd.f32 %v1002, %v1010
    %v1013 = vtanh.pop %v1012
    %1015 = vrot.lane.b32.xlu0 %v1013, 64
    %v1016 = vpop.permute.xlu0 %1015
    %v1018 = vmul.f32 %v1000, %v1016
    %1021 = vrot.lane.b32.xlu0 %v955, 64
    %v1022 = vpop.permute.xlu0 %1021
    %v1024 = vsel %vm122, %v958, %v1022
    %v1026 = vsel %vm250, %v1024, 0
    %1028 = vmatpush.msra.mxu0 0.0
    %1029 = vmatpush.msra.mxu0 0.0
    %1030 = vmatpush.msra.mxu0 0.0
    %1031 = vmatpush.msra.mxu0 0.0
    %1032 = vmatpush.msra.mxu0 0.0
    %1033 = vmatpush.msra.mxu0 0.0
    %1034 = vmatpush.msra.mxu0 0.0
    %1035 = vmatpush.msra.mxu0 0.0
    %1036 = vmatpush.msra.mxu0 %v41
    %1037 = vmatpush.msra.mxu0 %v40
    %1038 = vmatpush.msra.mxu0 %v39
    %1039 = vmatpush.msra.mxu0 %v38
    %1040 = vmatpush.msra.mxu0 %v37
    %1041 = vmatpush.msra.mxu0 %v36
    %1042 = vmatpush.msra.mxu0 %v35
    %1043 = vmatpush.msra.mxu0 %v34
    %1044 = vmatmul.f32.gmra.mxu0 %v1026
    %v1045 = vpop.f32.mrf.mxu0
    %v1046 = vadd.f32 %v249, %v1045
    %1047 = vdwg.mxu0
    %v1048 = vxor.u32 %v1046, 2147483648
    %v1049 = vmul.f32 %v1048, 1.442695
    %v1050 = vpow.pop %v1049
    %v1051 = vadd.f32 %v1050, 1.0
    %v1052 = vrcp.pop %v1051
    %v1053 = vmul.f32 %v1051, %v1052
    %v1054 = vsub.f32 1.0, %v1053
    %v1055 = vmul.f32 %v1052, %v1054
    %v1056 = vadd.f32 %v1052, %v1055
    %vm1057 = vweird.f32 %v1051
    %vm1058 = vweird.f32 %v1052
    %vm1059 = vmor %vm1057, %vm1058
    %v1060 = vsel %vm1059, %v1052, %v1056
    %v1061 = vand.u32 2147483647, %v1051
    %vm1062 = vcmp.eq.f32.partialorder %v1061, 8.507059e+37
    %v1063 = vand.u32 %v1051, 2147483648
    %v1064 = vor.u32 1.1754944e-38, %v1063
    %v1065 = vsel %vm1062, %v1064, %v1060
    %v1066 = vmul.f32 1.0, %v1065
    %v1067 = vtanh.pop %v1046
    %v1068 = vmul.f32 %v1066, %v949
    %1070 = vrot.lane.b32.xlu0 %v1067, 64
    %v1071 = vpop.permute.xlu0 %1070
    %v1073 = vmul.f32 %v1066, %v1071
    %1075 = vrot.lane.b32.xlu0 %v1073, 32
    %v1076 = vpop.permute.xlu0 %1075
    %v1078 = vadd.f32 %v1068, %v1076
    %v1079 = vtanh.pop %v1078
    %1081 = vrot.lane.b32.xlu0 %v1079, 64
    %v1082 = vpop.permute.xlu0 %1081
    %v1084 = vmul.f32 %v1066, %v1082
    %1086 = vrot.lane.b32.xlu0 %v1018, 32
    %v1087 = vpop.permute.xlu0 %1086
    %1090 = vrot.lane.b32.xlu0 %v1084, 64
    %v1091 = vpop.permute.xlu0 %1090
    %v1093 = vsel %vm122, %v1087, %v1091
    %v1095 = vsel %vm250, %v1093, 0
    %1097 = vmatpush.msra.mxu0 0.0
    %1098 = vmatpush.msra.mxu0 0.0
    %1099 = vmatpush.msra.mxu0 0.0
    %1100 = vmatpush.msra.mxu0 0.0
    %1101 = vmatpush.msra.mxu0 0.0
    %1102 = vmatpush.msra.mxu0 0.0
    %1103 = vmatpush.msra.mxu0 0.0
    %1104 = vmatpush.msra.mxu0 0.0
    %1105 = vmatpush.msra.mxu0 %v41
    %1106 = vmatpush.msra.mxu0 %v40
    %1107 = vmatpush.msra.mxu0 %v39
    %1108 = vmatpush.msra.mxu0 %v38
    %1109 = vmatpush.msra.mxu0 %v37
    %1110 = vmatpush.msra.mxu0 %v36
    %1111 = vmatpush.msra.mxu0 %v35
    %1112 = vmatpush.msra.mxu0 %v34
    %1113 = vmatmul.f32.gmra.mxu0 %v1095
    %v1114 = vpop.f32.mrf.mxu0
    %v1115 = vadd.f32 %v249, %v1114
    %1116 = vdwg.mxu0
    %v1117 = vxor.u32 %v1115, 2147483648
    %v1118 = vmul.f32 %v1117, 1.442695
    %v1119 = vpow.pop %v1118
    %v1120 = vadd.f32 %v1119, 1.0
    %v1121 = vrcp.pop %v1120
    %v1122 = vmul.f32 %v1120, %v1121
    %v1123 = vsub.f32 1.0, %v1122
    %v1124 = vmul.f32 %v1121, %v1123
    %v1125 = vadd.f32 %v1121, %v1124
    %vm1126 = vweird.f32 %v1120
    %vm1127 = vweird.f32 %v1121
    %vm1128 = vmor %vm1126, %vm1127
    %v1129 = vsel %vm1128, %v1121, %v1125
    %v1130 = vand.u32 2147483647, %v1120
    %vm1131 = vcmp.eq.f32.partialorder %v1130, 8.507059e+37
    %v1132 = vand.u32 %v1120, 2147483648
    %v1133 = vor.u32 1.1754944e-38, %v1132
    %v1134 = vsel %vm1131, %v1133, %v1129
    %v1135 = vmul.f32 1.0, %v1134
    %v1136 = vtanh.pop %v1115
    %v1137 = vmul.f32 %v1135, %v1078
    %1139 = vrot.lane.b32.xlu0 %v1136, 64
    %v1140 = vpop.permute.xlu0 %1139
    %v1142 = vmul.f32 %v1135, %v1140
    %1144 = vrot.lane.b32.xlu0 %v1142, 32
    %v1145 = vpop.permute.xlu0 %1144
    %v1147 = vadd.f32 %v1137, %v1145
    %v1148 = vtanh.pop %v1147
    %1150 = vrot.lane.b32.xlu0 %v1148, 64
    %v1151 = vpop.permute.xlu0 %1150
    %v1153 = vmul.f32 %v1135, %v1151
    %v1154 = vperm.slane %v46, 2
    %v1155 = vsel %vm122, %v1087, 0
    %1157 = vmatpush.msra.mxu0 0.0
    %1158 = vmatpush.msra.mxu0 0.0
    %1159 = vmatpush.msra.mxu0 0.0
    %1160 = vmatpush.msra.mxu0 0.0
    %1161 = vmatpush.msra.mxu0 0.0
    %1162 = vmatpush.msra.mxu0 0.0
    %1163 = vmatpush.msra.mxu0 0.0
    %1164 = vmatpush.msra.mxu0 0.0
    %1165 = vmatpush.msra.mxu0 0.0
    %1166 = vmatpush.msra.mxu0 0.0
    %1167 = vmatpush.msra.mxu0 0.0
    %1168 = vmatpush.msra.mxu0 0.0
    %1169 = vmatpush.msra.mxu0 %v45
    %1170 = vmatpush.msra.mxu0 %v44
    %1171 = vmatpush.msra.mxu0 %v43
    %1172 = vmatpush.msra.mxu0 %v42
    %1173 = vmatmul.f32.gmra.mxu0 %v1155
    %v1174 = vpop.f32.mrf.mxu0
    %v1175 = vadd.f32 %v1154, %v1174
    %1176 = vdwg.mxu0
    %1177 = vst [vmem:[#allocation5] sm:$0xff] %v1175
    %1179 = vrot.lane.b32.xlu0 %v1153, 32
    %v1180 = vpop.permute.xlu0 %1179
    %v1181 = vsel %vm122, %v1180, 0
    %1183 = vmatpush.msra.mxu0 0.0
    %1184 = vmatpush.msra.mxu0 0.0
    %1185 = vmatpush.msra.mxu0 0.0
    %1186 = vmatpush.msra.mxu0 0.0
    %1187 = vmatpush.msra.mxu0 0.0
    %1188 = vmatpush.msra.mxu0 0.0
    %1189 = vmatpush.msra.mxu0 0.0
    %1190 = vmatpush.msra.mxu0 0.0
    %1191 = vmatpush.msra.mxu0 0.0
    %1192 = vmatpush.msra.mxu0 0.0
    %1193 = vmatpush.msra.mxu0 0.0
    %1194 = vmatpush.msra.mxu0 0.0
    %1195 = vmatpush.msra.mxu0 %v45
    %1196 = vmatpush.msra.mxu0 %v44
    %1197 = vmatpush.msra.mxu0 %v43
    %1198 = vmatpush.msra.mxu0 %v42
    %1199 = vmatmul.f32.gmra.mxu0 %v1181
    %v1200 = vpop.f32.mrf.mxu0
    %v1201 = vadd.f32 %v1154, %v1200
    %1202 = vdwg.mxu0
    %1203 = vst [vmem:[#allocation5 + $0x8] sm:$0xff] %v1201
    // Predicated region
    $region14: #{tpu_custom_call.1} parent=1 // pred_check
      _
    $region15: #{tpu_custom_call.1} parent=1 // pred_check_branch
      %1205 = sbr.rel (0) target = $region17
    $region16: #{tpu_custom_call.1} parent=1 // pred_region
      %1207 = vsyncadd [#allocation4], 0
      %s1208 = sshll.u32 [#allocation5], 4
      %s1209 = int_to_ptr.vmem [resolvable:$true] %s1208
      %s1210 = sshll.u32 %s2, 4
      %s1211 = int_to_ptr.hbm [resolvable:$true] %s1210
      %1216 = dma.vmem_to_hbm [thread:$0]  %s1209, 256, %s1211, [#allocation4], 128, 128, 8
    $region17: #{tpu_custom_call.1} parent=1 // pred_fallthru
      _
    // Predicated region
    $region18: #{tpu_custom_call.1} parent=1 // pred_check
      _
    $region19: #{tpu_custom_call.1} parent=1 // pred_check_branch
      %1218 = sbr.rel (0) target = $region21
    $region20: #{tpu_custom_call.1} parent=1 // pred_region
      %1220 = dma.done [#allocation4], 256
    $region21: #{tpu_custom_call.1} parent=1 // pred_fallthru
      _
    %1221 = vsyncpa [#allocation3], 1
    %1222 = vsyncpa [#allocation4], 1

</llo_original>
